<compile_context>
chip_gen: v7x
topology: tpu7x:2x2x1
jax: 0.10.0
libtpu: 0.0.40
codegen_flags: <defaults>
</compile_context>

<pallas_src>
import jax
import jax.numpy as jnp
from jax.experimental import pallas as pl
from jax.experimental.pallas import tpu as pltpu

# ------------------------- config (small, deterministic) --------------------
BATCH = 2
SEQ = 8
HIDDEN = 32
NUM_HEADS = 4
HEAD_DIM = HIDDEN // NUM_HEADS
FFW_DIM = HIDDEN * 4          # == 4 * HIDDEN == 128
LN_EPS = 1e-5


def _layernorm(x, gamma, beta):
    mean = jnp.mean(x, axis=-1, keepdims=True)
    var = jnp.mean(jnp.square(x - mean), axis=-1, keepdims=True)
    return (x - mean) * jax.lax.rsqrt(var + LN_EPS) * gamma + beta


def transformer_block_kernel(
    x_ref,      # (B, S, H)
    w_ref,      # (3H, 4H) = [[Wq*s | Wk | Wv | Wo], [W1], [W2^T]]
    vec_ref,    # (8, 4H): rows = [bqkv*s pad, bf1, bo, g1, be1, bf2, g2, be2]
    out_ref,    # (B, S, H)
):
    B, S, H = x_ref.shape
    NH, HD = NUM_HEADS, HEAD_DIM
    f32 = jnp.float32

    x3 = x_ref[...].astype(f32)                 # (B, S, H)
    x2 = x3.reshape(B * S, H)                   # leading-dim merge only

    w = w_ref[...]                              # (96, 128)
    wqkvo = w[0:H, :]                           # (H, 4H) = [Wq*s|Wk|Wv|Wo]
    w1 = w[H:2 * H, :]                          # (H, F)
    w2t = w[2 * H:3 * H, :]                     # (H, F) = W2^T

    vec = vec_ref[...]                          # (8, 128)
    bqkvo = vec[0:1, :]                         # (1, 128)  (last 32 lanes = 0)
    bf1 = vec[1:2, :]                           # (1, 128)
    bo = vec[2:3, 0:H]
    g1 = vec[3:4, 0:H]
    be1 = vec[4:5, 0:H]
    bf2 = vec[5:6, 0:H]
    g2 = vec[6:7, 0:H]
    be2 = vec[7:8, 0:H]

    # ---- fused QKV projection: one lane-dense (B*S,H)x(H,4H) matmul --------
    # Columns 3H:4H (x @ Wo) are computed "for free" on the MXU and discarded.
    qkvo = jnp.dot(x2, wqkvo, preferred_element_type=f32) + bqkvo   # (B*S, 4H)
    qkv3 = qkvo.reshape(B, S, 4 * H)            # leading-dim split only

    # ---- per-head scaled dot-product attention (scale folded into Wq) ------
    att_heads = []
    for h in range(NH):                         # static 4-way loop, tiny tiles
        qh = qkv3[:, :, h * HD:(h + 1) * HD]                    # (B, S, HD)
        kh = qkv3[:, :, H + h * HD:H + (h + 1) * HD]
        vh = qkv3[:, :, 2 * H + h * HD:2 * H + (h + 1) * HD]
        sc = jnp.einsum("bqd,bkd->bqk", qh, kh,
                        preferred_element_type=f32)             # (B, S, S)
        sc = sc - jnp.max(sc, axis=-1, keepdims=True)
        p = jnp.exp(sc)
        p = p / jnp.sum(p, axis=-1, keepdims=True)              # exact divide
        att_heads.append(jnp.einsum("bqk,bkd->bqd", p, vh,
                                    preferred_element_type=f32))

    # ---- output projection: merge heads onto lanes, one (B*S,H)x(H,H) ------
    att2 = jnp.concatenate(att_heads, axis=-1).reshape(B * S, H)
    wo = wqkvo[:, 3 * H:4 * H]                                  # (H, H)
    proj = jnp.dot(att2, wo, preferred_element_type=f32)        # (B*S, H)

    # dropout (eval) = identity
    # ---- add & norm 1 -------------------------------------------------------
    h1 = _layernorm(x2 + proj + bo, g1, be1)

    # ---- feed-forward -------------------------------------------------------
    f = jnp.dot(h1, w1, preferred_element_type=f32) + bf1       # (B*S, F)
    f = jnp.maximum(f, 0.0)
    f = jax.lax.dot_general(f, w2t, (((1,), (1,)), ((), ())),   # f @ W2
                            preferred_element_type=f32) + bf2   # (B*S, H)

    # dropout (eval) = identity
    # ---- add & norm 2 -------------------------------------------------------
    h2 = _layernorm(h1 + f, g2, be2)
    out_ref[...] = h2.reshape(B, S, H).astype(out_ref.dtype)


def pack_params(params):
    """One-time packing of the 16 small params into 2 lane-dense slabs.

    Runs OUTSIDE the jitted forward (at init), so per-call cost is zero.
    """
    H = HIDDEN
    scale = 1.0 / (HEAD_DIM ** 0.5)

    wqkvo = jnp.concatenate(
        [params["wq"] * scale, params["wk"], params["wv"], params["wo"]],
        axis=1)                                                  # (H, 4H)
    w_packed = jnp.concatenate(
        [wqkvo, params["w1"], params["w2"].T], axis=0)           # (3H, 4H)

    def pad_row(v):                                              # (1,n)->(1,4H)
        return jnp.pad(v, ((0, 0), (0, 4 * H - v.shape[1])))

    bqkv = jnp.concatenate(
        [params["bq"] * scale, params["bk"], params["bv"]], axis=1)  # (1, 3H)
    vec_packed = jnp.concatenate(
        [pad_row(bqkv), pad_row(params["bf1"]),
         pad_row(params["bo"]), pad_row(params["g1"]), pad_row(params["be1"]),
         pad_row(params["bf2"]), pad_row(params["g2"]), pad_row(params["be2"])],
        axis=0)                                                  # (8, 4H)
    return w_packed, vec_packed


@jax.jit
def transformer_block(x, w_packed, vec_packed):
    B, S, D = x.shape
    vmem = pl.BlockSpec(memory_space=pltpu.MemorySpace.VMEM)
    return pl.pallas_call(
        transformer_block_kernel,
        out_shape=jax.ShapeDtypeStruct((B, S, D), x.dtype),
        in_specs=[vmem, vmem, vmem],
        out_specs=vmem,
    )(x, w_packed, vec_packed)


def init_params(key):
    ks = jax.random.split(key, 8)

    def lin(k, fan_in, fan_out):
        bound = 1.0 / (fan_in ** 0.5)
        kw, kb = jax.random.split(k)
        w = jax.random.uniform(kw, (fan_in, fan_out), jnp.float32, -bound, bound)
        b = jax.random.uniform(kb, (1, fan_out), jnp.float32, -bound, bound)
        return w, b

    wq, bq = lin(ks[0], HIDDEN, HIDDEN)
    wk, bk = lin(ks[1], HIDDEN, HIDDEN)
    wv, bv = lin(ks[2], HIDDEN, HIDDEN)
    wo, bo = lin(ks[3], HIDDEN, HIDDEN)
    w1, bf1 = lin(ks[4], HIDDEN, FFW_DIM)
    w2, bf2 = lin(ks[5], FFW_DIM, HIDDEN)
    return dict(
        wq=wq, bq=bq, wk=wk, bk=bk, wv=wv, bv=bv, wo=wo, bo=bo,
        w1=w1, bf1=bf1, w2=w2, bf2=bf2,
        g1=jnp.ones((1, HIDDEN), jnp.float32),
        be1=jnp.zeros((1, HIDDEN), jnp.float32),
        g2=jnp.ones((1, HIDDEN), jnp.float32),
        be2=jnp.zeros((1, HIDDEN), jnp.float32),
    )


def reference(x, p):
    """Pure-JAX reference of the same forward pass."""
    def ln(v, g, b):
        mu = jnp.mean(v, axis=-1, keepdims=True)
        var = jnp.mean((v - mu) ** 2, axis=-1, keepdims=True)
        return (v - mu) / jnp.sqrt(var + LN_EPS) * g + b

    q = x @ p["wq"] + p["bq"]
    k = x @ p["wk"] + p["bk"]
    v = x @ p["wv"] + p["bv"]
    B, S, D = x.shape
    q = q.reshape(B, S, NUM_HEADS, HEAD_DIM).transpose(0, 2, 1, 3)
    k = k.reshape(B, S, NUM_HEADS, HEAD_DIM).transpose(0, 2, 1, 3)
    v = v.reshape(B, S, NUM_HEADS, HEAD_DIM).transpose(0, 2, 1, 3)
    s = jnp.einsum("bhqd,bhkd->bhqk", q, k) / (HEAD_DIM ** 0.5)
    pmat = jax.nn.softmax(s, axis=-1)
    att = jnp.einsum("bhqk,bhkd->bhqd", pmat, v).transpose(0, 2, 1, 3).reshape(B, S, D)
    att = att @ p["wo"] + p["bo"]
    h1 = ln(x + att, p["g1"], p["be1"])
    f = jnp.maximum(h1 @ p["w1"] + p["bf1"], 0.0) @ p["w2"] + p["bf2"]
    return ln(h1 + f, p["g2"], p["be2"])


if __name__ == "__main__":
    key = jax.random.PRNGKey(0)
    kx, kp = jax.random.split(key)
    x = jax.random.normal(kx, (BATCH, SEQ, HIDDEN), jnp.float32)
    params = init_params(kp)

    # One-time packing (outside the jitted per-call forward path).
    w_packed, vec_packed = pack_params(params)
    w_packed = jax.block_until_ready(w_packed)
    vec_packed = jax.block_until_ready(vec_packed)

    out = transformer_block(x, w_packed, vec_packed)
    out = jax.block_until_ready(out)

    ref = reference(x, params)
    assert out.shape == (BATCH, SEQ, HIDDEN)
    assert jnp.allclose(out, ref, atol=1e-4, rtol=1e-4), (
        float(jnp.max(jnp.abs(out - ref)))
    )
    print("KERNEL_OK")
</pallas_src>

<mosaic_0001>
module attributes {stable_mosaic.version = 11 : i64} {
  func.func @transformer_block_kernel(%arg0: memref<2x8x32xf32, #tpu.memory_space<vmem>>, %arg1: memref<96x128xf32, #tpu.memory_space<vmem>>, %arg2: memref<8x128xf32, #tpu.memory_space<vmem>>, %arg3: memref<2x8x32xf32, #tpu.memory_space<vmem>>) attributes {dimension_semantics = [], scalar_prefetch = 0 : i64, scratch_operands = 0 : i64, tpu.core_type = #tpu.core_type<tc>} {
    %c0 = arith.constant 0 : index
    %c0_0 = arith.constant 0 : index
    %c0_1 = arith.constant 0 : index
    %0 = vector.load %arg0[%c0, %c0_0, %c0_1] : memref<2x8x32xf32, #tpu.memory_space<vmem>>, vector<2x8x32xf32>
    %1 = vector.shape_cast %0 : vector<2x8x32xf32> to vector<16x32xf32>
    %c0_2 = arith.constant 0 : index
    %c0_3 = arith.constant 0 : index
    %2 = vector.load %arg1[%c0_2, %c0_3] : memref<96x128xf32, #tpu.memory_space<vmem>>, vector<96x128xf32>
    %3 = vector.extract_strided_slice %2 {offsets = [0, 0], sizes = [32, 128], strides = [1, 1]} : vector<96x128xf32> to vector<32x128xf32>
    %4 = vector.extract_strided_slice %2 {offsets = [32, 0], sizes = [32, 128], strides = [1, 1]} : vector<96x128xf32> to vector<32x128xf32>
    %5 = vector.extract_strided_slice %2 {offsets = [64, 0], sizes = [32, 128], strides = [1, 1]} : vector<96x128xf32> to vector<32x128xf32>
    %c0_4 = arith.constant 0 : index
    %c0_5 = arith.constant 0 : index
    %6 = vector.load %arg2[%c0_4, %c0_5] : memref<8x128xf32, #tpu.memory_space<vmem>>, vector<8x128xf32>
    %7 = vector.extract_strided_slice %6 {offsets = [0, 0], sizes = [1, 128], strides = [1, 1]} : vector<8x128xf32> to vector<1x128xf32>
    %8 = vector.extract_strided_slice %6 {offsets = [1, 0], sizes = [1, 128], strides = [1, 1]} : vector<8x128xf32> to vector<1x128xf32>
    %9 = vector.extract_strided_slice %6 {offsets = [2, 0], sizes = [1, 32], strides = [1, 1]} : vector<8x128xf32> to vector<1x32xf32>
    %10 = vector.extract_strided_slice %6 {offsets = [3, 0], sizes = [1, 32], strides = [1, 1]} : vector<8x128xf32> to vector<1x32xf32>
    %11 = vector.extract_strided_slice %6 {offsets = [4, 0], sizes = [1, 32], strides = [1, 1]} : vector<8x128xf32> to vector<1x32xf32>
    %12 = vector.extract_strided_slice %6 {offsets = [5, 0], sizes = [1, 32], strides = [1, 1]} : vector<8x128xf32> to vector<1x32xf32>
    %13 = vector.extract_strided_slice %6 {offsets = [6, 0], sizes = [1, 32], strides = [1, 1]} : vector<8x128xf32> to vector<1x32xf32>
    %14 = vector.extract_strided_slice %6 {offsets = [7, 0], sizes = [1, 32], strides = [1, 1]} : vector<8x128xf32> to vector<1x32xf32>
    %cst = arith.constant dense<0.000000e+00> : vector<16x128xf32>
    %15 = tpu.matmul %1, %3, %cst {dimension_numbers = #tpu.dot_dimension_numbers<[1], [0], [0], [1], [0, 0, 1, 1], [], []>} : vector<16x32xf32>, vector<32x128xf32>, vector<16x128xf32> -> vector<16x128xf32>
    %16 = vector.broadcast %7 : vector<1x128xf32> to vector<16x128xf32>
    %17 = arith.addf %15, %16 : vector<16x128xf32>
    %18 = vector.shape_cast %17 : vector<16x128xf32> to vector<2x8x128xf32>
    %19 = vector.extract_strided_slice %18 {offsets = [0, 0, 0], sizes = [2, 8, 8], strides = [1, 1, 1]} : vector<2x8x128xf32> to vector<2x8x8xf32>
    %20 = vector.extract_strided_slice %18 {offsets = [0, 0, 32], sizes = [2, 8, 8], strides = [1, 1, 1]} : vector<2x8x128xf32> to vector<2x8x8xf32>
    %21 = vector.extract_strided_slice %18 {offsets = [0, 0, 64], sizes = [2, 8, 8], strides = [1, 1, 1]} : vector<2x8x128xf32> to vector<2x8x8xf32>
    "tpu.trace_start"() <{level = 10 : i32, message = "bqd,bkd->bqk"}> : () -> ()
    %cst_6 = arith.constant dense<0.000000e+00> : vector<2x8x8xf32>
    %22 = tpu.matmul %19, %20, %cst_6 {dimension_numbers = #tpu.dot_dimension_numbers<[2], [2], [1], [1], [0, 0, 0, 1, 1, 1], [0], [0]>} : vector<2x8x8xf32>, vector<2x8x8xf32>, vector<2x8x8xf32> -> vector<2x8x8xf32>
    "tpu.trace_stop"() : () -> ()
    %cst_7 = arith.constant dense<0xFF800000> : vector<2x8xf32>
    %23 = vector.multi_reduction <maximumf>, %22, %cst_7 [2] : vector<2x8x8xf32> to vector<2x8xf32>
    %24 = vector.shape_cast %23 : vector<2x8xf32> to vector<2x8x1xf32>
    %25 = vector.broadcast %24 : vector<2x8x1xf32> to vector<2x8x8xf32>
    %26 = arith.subf %22, %25 : vector<2x8x8xf32>
    %27 = math.exp %26 : vector<2x8x8xf32>
    %cst_8 = arith.constant dense<0.000000e+00> : vector<2x8xf32>
    %28 = vector.multi_reduction <add>, %27, %cst_8 [2] : vector<2x8x8xf32> to vector<2x8xf32>
    %29 = vector.shape_cast %28 : vector<2x8xf32> to vector<2x8x1xf32>
    %30 = vector.broadcast %29 : vector<2x8x1xf32> to vector<2x8x8xf32>
    %31 = arith.divf %27, %30 : vector<2x8x8xf32>
    "tpu.trace_start"() <{level = 10 : i32, message = "bqk,bkd->bqd"}> : () -> ()
    %cst_9 = arith.constant dense<0.000000e+00> : vector<2x8x8xf32>
    %32 = tpu.matmul %31, %21, %cst_9 {dimension_numbers = #tpu.dot_dimension_numbers<[2], [1], [1], [2], [0, 0, 0, 1, 1, 2], [0], [0]>} : vector<2x8x8xf32>, vector<2x8x8xf32>, vector<2x8x8xf32> -> vector<2x8x8xf32>
    "tpu.trace_stop"() : () -> ()
    %33 = vector.extract_strided_slice %18 {offsets = [0, 0, 8], sizes = [2, 8, 8], strides = [1, 1, 1]} : vector<2x8x128xf32> to vector<2x8x8xf32>
    %34 = vector.extract_strided_slice %18 {offsets = [0, 0, 40], sizes = [2, 8, 8], strides = [1, 1, 1]} : vector<2x8x128xf32> to vector<2x8x8xf32>
    %35 = vector.extract_strided_slice %18 {offsets = [0, 0, 72], sizes = [2, 8, 8], strides = [1, 1, 1]} : vector<2x8x128xf32> to vector<2x8x8xf32>
    "tpu.trace_start"() <{level = 10 : i32, message = "bqd,bkd->bqk"}> : () -> ()
    %cst_10 = arith.constant dense<0.000000e+00> : vector<2x8x8xf32>
    %36 = tpu.matmul %33, %34, %cst_10 {dimension_numbers = #tpu.dot_dimension_numbers<[2], [2], [1], [1], [0, 0, 0, 1, 1, 1], [0], [0]>} : vector<2x8x8xf32>, vector<2x8x8xf32>, vector<2x8x8xf32> -> vector<2x8x8xf32>
    "tpu.trace_stop"() : () -> ()
    %cst_11 = arith.constant dense<0xFF800000> : vector<2x8xf32>
    %37 = vector.multi_reduction <maximumf>, %36, %cst_11 [2] : vector<2x8x8xf32> to vector<2x8xf32>
    %38 = vector.shape_cast %37 : vector<2x8xf32> to vector<2x8x1xf32>
    %39 = vector.broadcast %38 : vector<2x8x1xf32> to vector<2x8x8xf32>
    %40 = arith.subf %36, %39 : vector<2x8x8xf32>
    %41 = math.exp %40 : vector<2x8x8xf32>
    %cst_12 = arith.constant dense<0.000000e+00> : vector<2x8xf32>
    %42 = vector.multi_reduction <add>, %41, %cst_12 [2] : vector<2x8x8xf32> to vector<2x8xf32>
    %43 = vector.shape_cast %42 : vector<2x8xf32> to vector<2x8x1xf32>
    %44 = vector.broadcast %43 : vector<2x8x1xf32> to vector<2x8x8xf32>
    %45 = arith.divf %41, %44 : vector<2x8x8xf32>
    "tpu.trace_start"() <{level = 10 : i32, message = "bqk,bkd->bqd"}> : () -> ()
    %cst_13 = arith.constant dense<0.000000e+00> : vector<2x8x8xf32>
    %46 = tpu.matmul %45, %35, %cst_13 {dimension_numbers = #tpu.dot_dimension_numbers<[2], [1], [1], [2], [0, 0, 0, 1, 1, 2], [0], [0]>} : vector<2x8x8xf32>, vector<2x8x8xf32>, vector<2x8x8xf32> -> vector<2x8x8xf32>
    "tpu.trace_stop"() : () -> ()
    %47 = vector.extract_strided_slice %18 {offsets = [0, 0, 16], sizes = [2, 8, 8], strides = [1, 1, 1]} : vector<2x8x128xf32> to vector<2x8x8xf32>
    %48 = vector.extract_strided_slice %18 {offsets = [0, 0, 48], sizes = [2, 8, 8], strides = [1, 1, 1]} : vector<2x8x128xf32> to vector<2x8x8xf32>
    %49 = vector.extract_strided_slice %18 {offsets = [0, 0, 80], sizes = [2, 8, 8], strides = [1, 1, 1]} : vector<2x8x128xf32> to vector<2x8x8xf32>
    "tpu.trace_start"() <{level = 10 : i32, message = "bqd,bkd->bqk"}> : () -> ()
    %cst_14 = arith.constant dense<0.000000e+00> : vector<2x8x8xf32>
    %50 = tpu.matmul %47, %48, %cst_14 {dimension_numbers = #tpu.dot_dimension_numbers<[2], [2], [1], [1], [0, 0, 0, 1, 1, 1], [0], [0]>} : vector<2x8x8xf32>, vector<2x8x8xf32>, vector<2x8x8xf32> -> vector<2x8x8xf32>
    "tpu.trace_stop"() : () -> ()
    %cst_15 = arith.constant dense<0xFF800000> : vector<2x8xf32>
    %51 = vector.multi_reduction <maximumf>, %50, %cst_15 [2] : vector<2x8x8xf32> to vector<2x8xf32>
    %52 = vector.shape_cast %51 : vector<2x8xf32> to vector<2x8x1xf32>
    %53 = vector.broadcast %52 : vector<2x8x1xf32> to vector<2x8x8xf32>
    %54 = arith.subf %50, %53 : vector<2x8x8xf32>
    %55 = math.exp %54 : vector<2x8x8xf32>
    %cst_16 = arith.constant dense<0.000000e+00> : vector<2x8xf32>
    %56 = vector.multi_reduction <add>, %55, %cst_16 [2] : vector<2x8x8xf32> to vector<2x8xf32>
    %57 = vector.shape_cast %56 : vector<2x8xf32> to vector<2x8x1xf32>
    %58 = vector.broadcast %57 : vector<2x8x1xf32> to vector<2x8x8xf32>
    %59 = arith.divf %55, %58 : vector<2x8x8xf32>
    "tpu.trace_start"() <{level = 10 : i32, message = "bqk,bkd->bqd"}> : () -> ()
    %cst_17 = arith.constant dense<0.000000e+00> : vector<2x8x8xf32>
    %60 = tpu.matmul %59, %49, %cst_17 {dimension_numbers = #tpu.dot_dimension_numbers<[2], [1], [1], [2], [0, 0, 0, 1, 1, 2], [0], [0]>} : vector<2x8x8xf32>, vector<2x8x8xf32>, vector<2x8x8xf32> -> vector<2x8x8xf32>
    "tpu.trace_stop"() : () -> ()
    %61 = vector.extract_strided_slice %18 {offsets = [0, 0, 24], sizes = [2, 8, 8], strides = [1, 1, 1]} : vector<2x8x128xf32> to vector<2x8x8xf32>
    %62 = vector.extract_strided_slice %18 {offsets = [0, 0, 56], sizes = [2, 8, 8], strides = [1, 1, 1]} : vector<2x8x128xf32> to vector<2x8x8xf32>
    %63 = vector.extract_strided_slice %18 {offsets = [0, 0, 88], sizes = [2, 8, 8], strides = [1, 1, 1]} : vector<2x8x128xf32> to vector<2x8x8xf32>
    "tpu.trace_start"() <{level = 10 : i32, message = "bqd,bkd->bqk"}> : () -> ()
    %cst_18 = arith.constant dense<0.000000e+00> : vector<2x8x8xf32>
    %64 = tpu.matmul %61, %62, %cst_18 {dimension_numbers = #tpu.dot_dimension_numbers<[2], [2], [1], [1], [0, 0, 0, 1, 1, 1], [0], [0]>} : vector<2x8x8xf32>, vector<2x8x8xf32>, vector<2x8x8xf32> -> vector<2x8x8xf32>
    "tpu.trace_stop"() : () -> ()
    %cst_19 = arith.constant dense<0xFF800000> : vector<2x8xf32>
    %65 = vector.multi_reduction <maximumf>, %64, %cst_19 [2] : vector<2x8x8xf32> to vector<2x8xf32>
    %66 = vector.shape_cast %65 : vector<2x8xf32> to vector<2x8x1xf32>
    %67 = vector.broadcast %66 : vector<2x8x1xf32> to vector<2x8x8xf32>
    %68 = arith.subf %64, %67 : vector<2x8x8xf32>
    %69 = math.exp %68 : vector<2x8x8xf32>
    %cst_20 = arith.constant dense<0.000000e+00> : vector<2x8xf32>
    %70 = vector.multi_reduction <add>, %69, %cst_20 [2] : vector<2x8x8xf32> to vector<2x8xf32>
    %71 = vector.shape_cast %70 : vector<2x8xf32> to vector<2x8x1xf32>
    %72 = vector.broadcast %71 : vector<2x8x1xf32> to vector<2x8x8xf32>
    %73 = arith.divf %69, %72 : vector<2x8x8xf32>
    "tpu.trace_start"() <{level = 10 : i32, message = "bqk,bkd->bqd"}> : () -> ()
    %cst_21 = arith.constant dense<0.000000e+00> : vector<2x8x8xf32>
    %74 = tpu.matmul %73, %63, %cst_21 {dimension_numbers = #tpu.dot_dimension_numbers<[2], [1], [1], [2], [0, 0, 0, 1, 1, 2], [0], [0]>} : vector<2x8x8xf32>, vector<2x8x8xf32>, vector<2x8x8xf32> -> vector<2x8x8xf32>
    "tpu.trace_stop"() : () -> ()
    %75 = tpu.concatenate %32, %46, %60, %74 in 2 : vector<2x8x8xf32>, vector<2x8x8xf32>, vector<2x8x8xf32>, vector<2x8x8xf32> -> vector<2x8x32xf32>
    %76 = vector.shape_cast %75 : vector<2x8x32xf32> to vector<16x32xf32>
    %77 = vector.extract_strided_slice %3 {offsets = [0, 96], sizes = [32, 32], strides = [1, 1]} : vector<32x128xf32> to vector<32x32xf32>
    %cst_22 = arith.constant dense<0.000000e+00> : vector<16x32xf32>
    %78 = tpu.matmul %76, %77, %cst_22 {dimension_numbers = #tpu.dot_dimension_numbers<[1], [0], [0], [1], [0, 0, 1, 1], [], []>} : vector<16x32xf32>, vector<32x32xf32>, vector<16x32xf32> -> vector<16x32xf32>
    %79 = arith.addf %1, %78 : vector<16x32xf32>
    %80 = vector.broadcast %9 : vector<1x32xf32> to vector<16x32xf32>
    %81 = arith.addf %79, %80 : vector<16x32xf32>
    %cst_23 = arith.constant dense<0.000000e+00> : vector<16xf32>
    %82 = vector.multi_reduction <add>, %81, %cst_23 [1] : vector<16x32xf32> to vector<16xf32>
    %83 = vector.shape_cast %82 : vector<16xf32> to vector<16x1xf32>
    %cst_24 = arith.constant 3.200000e+01 : f32
    %84 = vector.broadcast %cst_24 : f32 to vector<16x1xf32>
    %85 = arith.divf %83, %84 : vector<16x1xf32>
    %86 = vector.broadcast %85 : vector<16x1xf32> to vector<16x32xf32>
    %87 = arith.subf %81, %86 : vector<16x32xf32>
    %88 = arith.mulf %87, %87 : vector<16x32xf32>
    %cst_25 = arith.constant dense<0.000000e+00> : vector<16xf32>
    %89 = vector.multi_reduction <add>, %88, %cst_25 [1] : vector<16x32xf32> to vector<16xf32>
    %90 = vector.shape_cast %89 : vector<16xf32> to vector<16x1xf32>
    %cst_26 = arith.constant 3.200000e+01 : f32
    %91 = vector.broadcast %cst_26 : f32 to vector<16x1xf32>
    %92 = arith.divf %90, %91 : vector<16x1xf32>
    %93 = vector.broadcast %85 : vector<16x1xf32> to vector<16x32xf32>
    %94 = arith.subf %81, %93 : vector<16x32xf32>
    %cst_27 = arith.constant 9.99999974E-6 : f32
    %95 = vector.broadcast %cst_27 : f32 to vector<16x1xf32>
    %96 = arith.addf %92, %95 : vector<16x1xf32>
    %97 = math.rsqrt %96 : vector<16x1xf32>
    %98 = vector.broadcast %97 : vector<16x1xf32> to vector<16x32xf32>
    %99 = arith.mulf %94, %98 : vector<16x32xf32>
    %100 = vector.broadcast %10 : vector<1x32xf32> to vector<16x32xf32>
    %101 = arith.mulf %99, %100 : vector<16x32xf32>
    %102 = vector.broadcast %11 : vector<1x32xf32> to vector<16x32xf32>
    %103 = arith.addf %101, %102 : vector<16x32xf32>
    %cst_28 = arith.constant dense<0.000000e+00> : vector<16x128xf32>
    %104 = tpu.matmul %103, %4, %cst_28 {dimension_numbers = #tpu.dot_dimension_numbers<[1], [0], [0], [1], [0, 0, 1, 1], [], []>} : vector<16x32xf32>, vector<32x128xf32>, vector<16x128xf32> -> vector<16x128xf32>
    %105 = vector.broadcast %8 : vector<1x128xf32> to vector<16x128xf32>
    %106 = arith.addf %104, %105 : vector<16x128xf32>
    %cst_29 = arith.constant 0.000000e+00 : f32
    %107 = vector.broadcast %cst_29 : f32 to vector<16x128xf32>
    %108 = arith.maximumf %106, %107 : vector<16x128xf32>
    %cst_30 = arith.constant dense<0.000000e+00> : vector<16x32xf32>
    %109 = tpu.matmul %108, %5, %cst_30 {dimension_numbers = #tpu.dot_dimension_numbers<[1], [1], [0], [0], [0, 0, 1, 0], [], []>} : vector<16x128xf32>, vector<32x128xf32>, vector<16x32xf32> -> vector<16x32xf32>
    %110 = vector.broadcast %12 : vector<1x32xf32> to vector<16x32xf32>
    %111 = arith.addf %109, %110 : vector<16x32xf32>
    %112 = arith.addf %103, %111 : vector<16x32xf32>
    %cst_31 = arith.constant dense<0.000000e+00> : vector<16xf32>
    %113 = vector.multi_reduction <add>, %112, %cst_31 [1] : vector<16x32xf32> to vector<16xf32>
    %114 = vector.shape_cast %113 : vector<16xf32> to vector<16x1xf32>
    %cst_32 = arith.constant 3.200000e+01 : f32
    %115 = vector.broadcast %cst_32 : f32 to vector<16x1xf32>
    %116 = arith.divf %114, %115 : vector<16x1xf32>
    %117 = vector.broadcast %116 : vector<16x1xf32> to vector<16x32xf32>
    %118 = arith.subf %112, %117 : vector<16x32xf32>
    %119 = arith.mulf %118, %118 : vector<16x32xf32>
    %cst_33 = arith.constant dense<0.000000e+00> : vector<16xf32>
    %120 = vector.multi_reduction <add>, %119, %cst_33 [1] : vector<16x32xf32> to vector<16xf32>
    %121 = vector.shape_cast %120 : vector<16xf32> to vector<16x1xf32>
    %cst_34 = arith.constant 3.200000e+01 : f32
    %122 = vector.broadcast %cst_34 : f32 to vector<16x1xf32>
    %123 = arith.divf %121, %122 : vector<16x1xf32>
    %124 = vector.broadcast %116 : vector<16x1xf32> to vector<16x32xf32>
    %125 = arith.subf %112, %124 : vector<16x32xf32>
    %cst_35 = arith.constant 9.99999974E-6 : f32
    %126 = vector.broadcast %cst_35 : f32 to vector<16x1xf32>
    %127 = arith.addf %123, %126 : vector<16x1xf32>
    %128 = math.rsqrt %127 : vector<16x1xf32>
    %129 = vector.broadcast %128 : vector<16x1xf32> to vector<16x32xf32>
    %130 = arith.mulf %125, %129 : vector<16x32xf32>
    %131 = vector.broadcast %13 : vector<1x32xf32> to vector<16x32xf32>
    %132 = arith.mulf %130, %131 : vector<16x32xf32>
    %133 = vector.broadcast %14 : vector<1x32xf32> to vector<16x32xf32>
    %134 = arith.addf %132, %133 : vector<16x32xf32>
    %135 = vector.shape_cast %134 : vector<16x32xf32> to vector<2x8x32xf32>
    %c0_36 = arith.constant 0 : index
    %c0_37 = arith.constant 0 : index
    %c0_38 = arith.constant 0 : index
    %136 = vector.load %arg3[%c0_36, %c0_37, %c0_38] : memref<2x8x32xf32, #tpu.memory_space<vmem>>, vector<2x8x32xf32>
    tpu.vector_store %arg3[%c0_36, %c0_37, %c0_38], %135 {strides = array<i32>} : memref<2x8x32xf32, #tpu.memory_space<vmem>>, vector<2x8x32xf32>,
    return
  }
}

</mosaic_0001>

<llo_original>
// kernel: transformer_block.1
$region0: #{transformer_block.1}
  #allocation0 [shape = 'u32[]', space=smem, size = 0x4, offset = 0x4, fixed_abs, tag = 'smem constant byte address 0x4 - core index']
  #allocation1 [shape = 'u32[144,128]{1,0:T(1,128)}', space=vmem, size = 0x12000, scoped, tag = 'internal scratch']
  %s0 = inlined_call_operand.hbm [shape: f32[2,8,32], index: 0, kind: input, shape index: {}]
  %s1 = inlined_call_operand.hbm [shape: f32[96,128], index: 1, kind: input, shape index: {}]
  %s2 = inlined_call_operand.hbm [shape: f32[8,128], index: 2, kind: input, shape index: {}]
  %s3 = inlined_call_operand.hbm [shape: f32[2,8,32], index: 3, kind: output, shape index: {}]
  %s4 = sld [smem:[#allocation0]]
  $region34: #{transformer_block.1} parent=0
    _
  %s6 = ssub.s32 1, %s4
  %s7 = scalar_select 0, %s6, %s4
  $region1: #{transformer_block.1} parent=0
    #allocation2 [shape = 'u8[8192]{0}', space=vmem, size = 0x2000, scoped, tag = 'input window, operand 0, single buffered']
    #allocation3 [shape = 's32[1]{0}', space=sflag, size = 0x4, scoped, tag = 'scoped memory for transformer_block.1']
    #allocation4 [shape = 's32[1]{0}', space=sflag, size = 0x4, scoped, tag = 'scoped memory for transformer_block.1']
    #allocation5 [shape = 'u8[49152]{0}', space=vmem, size = 0xc000, scoped, tag = 'input window, operand 1, single buffered']
    #allocation6 [shape = 's32[1]{0}', space=sflag, size = 0x4, scoped, tag = 'scoped memory for transformer_block.1']
    #allocation7 [shape = 'u8[4096]{0}', space=vmem, size = 0x1000, scoped, tag = 'input window, operand 2, single buffered']
    #allocation8 [shape = 'u8[8192]{0}', space=vmem, size = 0x2000, scoped, tag = 'output window, operand 0, single buffered']
    %8 = vsyncpa [#allocation3], 0
    %9 = vsyncpa [#allocation6], 0
    %10 = vsyncpa [#allocation4], 0
    // Predicated region
    $region2: #{transformer_block.1} parent=1 // pred_check
      _
    $region3: #{transformer_block.1} parent=1 // pred_check_branch
      %12 = sbr.rel (0) target = $region5
    $region4: #{transformer_block.1} parent=1 // pred_region
      %s14 = ssub.s32 256, 256
      %15 = vsyncadd [#allocation3], %s14
      %s16 = sshll.u32 [#allocation2], 4
      %s17 = int_to_ptr.vmem [resolvable:$true] %s16
      %22 = dma.hbm_to_vmem [thread:$0]  %s0, 256, %s17, [#allocation3], 128, 128, 8
    $region5: #{transformer_block.1} parent=1 // pred_fallthru
      _
    // Predicated region
    $region6: #{transformer_block.1} parent=1 // pred_check
      _
    $region7: #{transformer_block.1} parent=1 // pred_check_branch
      %24 = sbr.rel (0) target = $region9
    $region8: #{transformer_block.1} parent=1 // pred_region
      %s26 = ssub.s32 1536, 1536
      %27 = vsyncadd [#allocation6], %s26
      %s28 = sshll.u32 [#allocation5], 4
      %s29 = int_to_ptr.vmem [resolvable:$true] %s28
      %34 = dma.hbm_to_vmem [thread:$0]  %s1, 1536, %s29, [#allocation6], 128, 128, 8
    $region9: #{transformer_block.1} parent=1 // pred_fallthru
      _
    // Predicated region
    $region10: #{transformer_block.1} parent=1 // pred_check
      _
    $region11: #{transformer_block.1} parent=1 // pred_check_branch
      %36 = sbr.rel (0) target = $region13
    $region12: #{transformer_block.1} parent=1 // pred_region
      %s38 = ssub.s32 128, 128
      %39 = vsyncadd [#allocation6], %s38
      %s41 = sshll.u32 [#allocation7], 4
      %s42 = int_to_ptr.vmem [resolvable:$true] %s41
      %44 = dma.hbm_to_vmem [thread:$0]  %s2, 128, %s42, [#allocation6]
    $region13: #{transformer_block.1} parent=1 // pred_fallthru
      _
    // Predicated region
    $region14: #{transformer_block.1} parent=1 // pred_check
      _
    $region15: #{transformer_block.1} parent=1 // pred_check_branch
      %46 = sbr.rel (0) target = $region17
    $region16: #{transformer_block.1} parent=1 // pred_region
      %47 = dma.done [#allocation3], 256
    $region17: #{transformer_block.1} parent=1 // pred_fallthru
      _
    // Predicated region
    $region18: #{transformer_block.1} parent=1 // pred_check
      _
    $region19: #{transformer_block.1} parent=1 // pred_check_branch
      %49 = sbr.rel (0) target = $region21
    $region20: #{transformer_block.1} parent=1 // pred_region
      %50 = dma.done [#allocation6], 1536
    $region21: #{transformer_block.1} parent=1 // pred_fallthru
      _
    // Predicated region
    $region22: #{transformer_block.1} parent=1 // pred_check
      _
    $region23: #{transformer_block.1} parent=1 // pred_check_branch
      %52 = sbr.rel (0) target = $region25
    $region24: #{transformer_block.1} parent=1 // pred_region
      %53 = dma.done [#allocation6], 128
    $region25: #{transformer_block.1} parent=1 // pred_fallthru
      _
    %v54 = vld [vmem:[#allocation2] sm:$0xff]
    %v55 = vld [vmem:[#allocation2 + $0x8] sm:$0xff]
    %v56 = vld [vmem:[#allocation5] sm:$0xff]
    %v57 = vld [vmem:[#allocation5 + $0x8] sm:$0xff]
    %v58 = vld [vmem:[#allocation5 + $0x10] sm:$0xff]
    %v59 = vld [vmem:[#allocation5 + $0x18] sm:$0xff]
    %v60 = vld [vmem:[#allocation5 + $0x20] sm:$0xff]
    %v61 = vld [vmem:[#allocation5 + $0x28] sm:$0xff]
    %v62 = vld [vmem:[#allocation5 + $0x30] sm:$0xff]
    %v63 = vld [vmem:[#allocation5 + $0x38] sm:$0xff]
    %v64 = vld [vmem:[#allocation5 + $0x40] sm:$0xff]
    %v65 = vld [vmem:[#allocation5 + $0x48] sm:$0xff]
    %v66 = vld [vmem:[#allocation5 + $0x50] sm:$0xff]
    %v67 = vld [vmem:[#allocation5 + $0x58] sm:$0xff]
    %v68 = vld [vmem:[#allocation7] sm:$0xff]
    %v69 = vlaneseq
    %v70 = vshrl.u32 %v69, 7
    %v71 = vsub.s32 0, %v70
    %v72 = vrot.slane %v68, %v71
    %vm73 = vcmask 261120
    %v75 = vsel %vm73, %v54, 0
    %v78 = vsel %vm73, %v55, 0
    %80 = vmatprep.subr.mxu0 0.0
    %81 = vmatpush1.msra.mxu0 %v56
    %82 = vmatprep.subr.mxu0 0.0
    %83 = vmatpush1.msra.mxu0 %v57
    %84 = vmatprep.subr.mxu0 0.0
    %85 = vmatpush1.msra.mxu0 %v58
    %86 = vmatprep.subr.mxu0 0.0
    %87 = vmatpush1.msra.mxu0 %v59
    %88 = vmatprep.subr.mxu0 0.0
    %89 = vmatpush1.msra.mxu0 0.0
    %90 = vmatprep.subr.mxu0 0.0
    %91 = vmatpush1.msra.mxu0 0.0
    %92 = vmatprep.subr.mxu0 0.0
    %93 = vmatpush1.msra.mxu0 0.0
    %94 = vmatprep.subr.mxu0 0.0
    %95 = vmatpush1.msra.mxu0 0.0
    %96 = vmatprep.subr.mxu0 0.0
    %97 = vmatpush1.msra.mxu0 0.0
    %98 = vmatprep.subr.mxu0 0.0
    %99 = vmatpush1.msra.mxu0 0.0
    %100 = vmatprep.subr.mxu0 0.0
    %101 = vmatpush1.msra.mxu0 0.0
    %102 = vmatprep.subr.mxu0 0.0
    %103 = vmatpush1.msra.mxu0 0.0
    %104 = vmatprep.subr.mxu0 0.0
    %105 = vmatpush1.msra.mxu0 0.0
    %106 = vmatprep.subr.mxu0 0.0
    %107 = vmatpush1.msra.mxu0 0.0
    %108 = vmatprep.subr.mxu0 0.0
    %109 = vmatpush1.msra.mxu0 0.0
    %110 = vmatprep.subr.mxu0 0.0
    %111 = vmatpush1.msra.mxu0 0.0
    %112 = vmatprep.subr.mxu0 0.0
    %113 = vmatpush1.msra.mxu0 0.0
    %114 = vmatprep.subr.mxu0 0.0
    %115 = vmatpush1.msra.mxu0 0.0
    %116 = vmatprep.subr.mxu0 0.0
    %117 = vmatpush1.msra.mxu0 0.0
    %118 = vmatprep.subr.mxu0 0.0
    %119 = vmatpush1.msra.mxu0 0.0
    %120 = vmatprep.subr.mxu0 0.0
    %121 = vmatpush1.msra.mxu0 0.0
    %122 = vmatprep.subr.mxu0 0.0
    %123 = vmatpush1.msra.mxu0 0.0
    %124 = vmatprep.subr.mxu0 0.0
    %125 = vmatpush1.msra.mxu0 0.0
    %126 = vmatprep.subr.mxu0 0.0
    %127 = vmatpush1.msra.mxu0 0.0
    %128 = vmatprep.subr.mxu0 0.0
    %129 = vmatpush1.msra.mxu0 0.0
    %130 = vmatprep.subr.mxu0 0.0
    %131 = vmatpush1.msra.mxu0 0.0
    %132 = vmatprep.subr.mxu0 0.0
    %133 = vmatpush1.msra.mxu0 0.0
    %134 = vmatprep.subr.mxu0 0.0
    %135 = vmatpush1.msra.mxu0 0.0
    %136 = vmatprep.subr.mxu0 0.0
    %137 = vmatpush1.msra.mxu0 0.0
    %138 = vmatprep.subr.mxu0 0.0
    %139 = vmatpush1.msra.mxu0 0.0
    %140 = vmatprep.subr.mxu0 0.0
    %141 = vmatpush1.msra.mxu0 0.0
    %142 = vmatprep.subr.mxu0 0.0
    %143 = vmatpush1.msra.mxu0 0.0
    %144 = vmatprep.mubr.f32.mxu0 0.0
    %145 = vmatmul.mubr.f32.gmra.mrb[0].mxu0 %v75
    %v146 = vpop.f32.mrb[0].mxu0
    %v147 = vadd.f32 %v72, %v146
    %v148 = vpop.f32.mrb[0].mxu0
    %149 = vmatprep.mubr.f32.mxu0 0.0
    %150 = vmatmul.mubr.f32.gmra.mrb[0].mxu0 %v78
    %v151 = vpop.f32.mrb[0].mxu0
    %v152 = vadd.f32 %v72, %v151
    %v153 = vpop.f32.mrb[0].mxu0
    %154 = vdwg.mxu0
    %156 = vrot.lane.b32.xlu0 %v147, 96
    %v157 = vpop.permute.xlu0 %156
    %vm158 = vcmask 64512
    %v159 = vsel %vm158, %v147, 0
    %v161 = vsel %vm158, %v157, 0
    %163 = vmatprep.subr.mxu0 0.0
    %164 = vmatpush1.xpose.msra.mxu0 %v161
    %165 = vmatprep.subr.mxu0 0.0
    %166 = vmatpush1.xpose.msra.mxu0 0.0
    %167 = vmatprep.subr.mxu0 0.0
    %168 = vmatpush1.xpose.msra.mxu0 0.0
    %169 = vmatprep.subr.mxu0 0.0
    %170 = vmatpush1.xpose.msra.mxu0 0.0
    %171 = vmatprep.subr.mxu0 0.0
    %172 = vmatpush1.xpose.msra.mxu0 0.0
    %173 = vmatprep.subr.mxu0 0.0
    %174 = vmatpush1.xpose.msra.mxu0 0.0
    %175 = vmatprep.subr.mxu0 0.0
    %176 = vmatpush1.xpose.msra.mxu0 0.0
    %177 = vmatprep.subr.mxu0 0.0
    %178 = vmatpush1.xpose.msra.mxu0 0.0
    %179 = vmatprep.subr.mxu0 0.0
    %180 = vmatpush1.xpose.msra.mxu0 0.0
    %181 = vmatprep.subr.mxu0 0.0
    %182 = vmatpush1.xpose.msra.mxu0 0.0
    %183 = vmatprep.subr.mxu0 0.0
    %184 = vmatpush1.xpose.msra.mxu0 0.0
    %185 = vmatprep.subr.mxu0 0.0
    %186 = vmatpush1.xpose.msra.mxu0 0.0
    %187 = vmatprep.subr.mxu0 0.0
    %188 = vmatpush1.xpose.msra.mxu0 0.0
    %189 = vmatprep.subr.mxu0 0.0
    %190 = vmatpush1.xpose.msra.mxu0 0.0
    %191 = vmatprep.subr.mxu0 0.0
    %192 = vmatpush1.xpose.msra.mxu0 0.0
    %193 = vmatprep.subr.mxu0 0.0
    %194 = vmatpush1.xpose.msra.mxu0 0.0
    %195 = vmatprep.subr.mxu0 0.0
    %196 = vmatpush1.xpose.msra.mxu0 0.0
    %197 = vmatprep.subr.mxu0 0.0
    %198 = vmatpush1.xpose.msra.mxu0 0.0
    %199 = vmatprep.subr.mxu0 0.0
    %200 = vmatpush1.xpose.msra.mxu0 0.0
    %201 = vmatprep.subr.mxu0 0.0
    %202 = vmatpush1.xpose.msra.mxu0 0.0
    %203 = vmatprep.subr.mxu0 0.0
    %204 = vmatpush1.xpose.msra.mxu0 0.0
    %205 = vmatprep.subr.mxu0 0.0
    %206 = vmatpush1.xpose.msra.mxu0 0.0
    %207 = vmatprep.subr.mxu0 0.0
    %208 = vmatpush1.xpose.msra.mxu0 0.0
    %209 = vmatprep.subr.mxu0 0.0
    %210 = vmatpush1.xpose.msra.mxu0 0.0
    %211 = vmatprep.subr.mxu0 0.0
    %212 = vmatpush1.xpose.msra.mxu0 0.0
    %213 = vmatprep.subr.mxu0 0.0
    %214 = vmatpush1.xpose.msra.mxu0 0.0
    %215 = vmatprep.subr.mxu0 0.0
    %216 = vmatpush1.xpose.msra.mxu0 0.0
    %217 = vmatprep.subr.mxu0 0.0
    %218 = vmatpush1.xpose.msra.mxu0 0.0
    %219 = vmatprep.subr.mxu0 0.0
    %220 = vmatpush1.xpose.msra.mxu0 0.0
    %221 = vmatprep.subr.mxu0 0.0
    %222 = vmatpush1.xpose.msra.mxu0 0.0
    %223 = vmatprep.subr.mxu0 0.0
    %224 = vmatpush1.xpose.msra.mxu0 0.0
    %225 = vmatprep.subr.mxu0 0.0
    %226 = vmatpush1.xpose.msra.mxu0 0.0
    %227 = vmatprep.mubr.f32.mxu0 0.0
    %228 = vmatmul.mubr.f32.gmra.mrb[0].mxu0 %v159
    %v229 = vpop.f32.mrb[0].mxu0
    %v230 = vadd.f32 0.0, %v229
    %v231 = vpop.f32.mrb[0].mxu0
    %232 = vdwg.mxu0
    %234 = vrot.lane.b32.xlu0 %v152, 96
    %v235 = vpop.permute.xlu0 %234
    %v236 = vsel %vm158, %v152, 0
    %v238 = vsel %vm158, %v235, 0
    %240 = vmatprep.subr.mxu0 0.0
    %241 = vmatpush1.xpose.msra.mxu0 %v238
    %242 = vmatprep.subr.mxu0 0.0
    %243 = vmatpush1.xpose.msra.mxu0 0.0
    %244 = vmatprep.subr.mxu0 0.0
    %245 = vmatpush1.xpose.msra.mxu0 0.0
    %246 = vmatprep.subr.mxu0 0.0
    %247 = vmatpush1.xpose.msra.mxu0 0.0
    %248 = vmatprep.subr.mxu0 0.0
    %249 = vmatpush1.xpose.msra.mxu0 0.0
    %250 = vmatprep.subr.mxu0 0.0
    %251 = vmatpush1.xpose.msra.mxu0 0.0
    %252 = vmatprep.subr.mxu0 0.0
    %253 = vmatpush1.xpose.msra.mxu0 0.0
    %254 = vmatprep.subr.mxu0 0.0
    %255 = vmatpush1.xpose.msra.mxu0 0.0
    %256 = vmatprep.subr.mxu0 0.0
    %257 = vmatpush1.xpose.msra.mxu0 0.0
    %258 = vmatprep.subr.mxu0 0.0
    %259 = vmatpush1.xpose.msra.mxu0 0.0
    %260 = vmatprep.subr.mxu0 0.0
    %261 = vmatpush1.xpose.msra.mxu0 0.0
    %262 = vmatprep.subr.mxu0 0.0
    %263 = vmatpush1.xpose.msra.mxu0 0.0
    %264 = vmatprep.subr.mxu0 0.0
    %265 = vmatpush1.xpose.msra.mxu0 0.0
    %266 = vmatprep.subr.mxu0 0.0
    %267 = vmatpush1.xpose.msra.mxu0 0.0
    %268 = vmatprep.subr.mxu0 0.0
    %269 = vmatpush1.xpose.msra.mxu0 0.0
    %270 = vmatprep.subr.mxu0 0.0
    %271 = vmatpush1.xpose.msra.mxu0 0.0
    %272 = vmatprep.subr.mxu0 0.0
    %273 = vmatpush1.xpose.msra.mxu0 0.0
    %274 = vmatprep.subr.mxu0 0.0
    %275 = vmatpush1.xpose.msra.mxu0 0.0
    %276 = vmatprep.subr.mxu0 0.0
    %277 = vmatpush1.xpose.msra.mxu0 0.0
    %278 = vmatprep.subr.mxu0 0.0
    %279 = vmatpush1.xpose.msra.mxu0 0.0
    %280 = vmatprep.subr.mxu0 0.0
    %281 = vmatpush1.xpose.msra.mxu0 0.0
    %282 = vmatprep.subr.mxu0 0.0
    %283 = vmatpush1.xpose.msra.mxu0 0.0
    %284 = vmatprep.subr.mxu0 0.0
    %285 = vmatpush1.xpose.msra.mxu0 0.0
    %286 = vmatprep.subr.mxu0 0.0
    %287 = vmatpush1.xpose.msra.mxu0 0.0
    %288 = vmatprep.subr.mxu0 0.0
    %289 = vmatpush1.xpose.msra.mxu0 0.0
    %290 = vmatprep.subr.mxu0 0.0
    %291 = vmatpush1.xpose.msra.mxu0 0.0
    %292 = vmatprep.subr.mxu0 0.0
    %293 = vmatpush1.xpose.msra.mxu0 0.0
    %294 = vmatprep.subr.mxu0 0.0
    %295 = vmatpush1.xpose.msra.mxu0 0.0
    %296 = vmatprep.subr.mxu0 0.0
    %297 = vmatpush1.xpose.msra.mxu0 0.0
    %298 = vmatprep.subr.mxu0 0.0
    %299 = vmatpush1.xpose.msra.mxu0 0.0
    %300 = vmatprep.subr.mxu0 0.0
    %301 = vmatpush1.xpose.msra.mxu0 0.0
    %302 = vmatprep.subr.mxu0 0.0
    %303 = vmatpush1.xpose.msra.mxu0 0.0
    %304 = vmatprep.mubr.f32.mxu0 0.0
    %305 = vmatmul.mubr.f32.gmra.mrb[0].mxu0 %v236
    %v306 = vpop.f32.mrb[0].mxu0
    %v307 = vadd.f32 0.0, %v306
    %v308 = vpop.f32.mrb[0].mxu0
    %309 = vdwg.mxu0
    %v310 = vsel %vm158, %v230, -inf
    %311 = vmax.xlane.f32.xlu0 %v310
    %v312 = vpop.xlane.xlu0 %311
    %v313 = vsel %vm158, %v307, -inf
    %314 = vmax.xlane.f32.xlu0 %v313
    %v315 = vpop.xlane.xlu0 %314
    %v316 = vsub.f32 %v230, %v312
    %v317 = vsub.f32 %v307, %v315
    %v318 = vmul.f32 %v316, 1.442695
    %v319 = vpow.pop %v318
    %v320 = vmul.f32 %v317, 1.442695
    %v321 = vpow.pop %v320
    %v322 = vsel %vm158, %v319, 0.0
    %323 = vadd.xlane.f32.xlu0 %v322
    %v324 = vpop.xlane.xlu0 %323
    %v325 = vsel %vm158, %v321, 0.0
    %326 = vadd.xlane.f32.xlu0 %v325
    %v327 = vpop.xlane.xlu0 %326
    %v328 = vrcp.pop %v324
    %v329 = vmul.f32 %v319, %v328
    %v330 = vrcp.pop %v327
    %v331 = vmul.f32 %v321, %v330
    %332 = vrot.lane.b32.xlu0 %v147, 64
    %v333 = vpop.permute.xlu0 %332
    %v336 = vsel %vm158, %v329, 0
    %338 = vmatprep.subr.mxu0 0.0
    %339 = vmatpush1.msra.mxu0 %v333
    %340 = vmatprep.subr.mxu0 0.0
    %341 = vmatpush1.msra.mxu0 0.0
    %342 = vmatprep.subr.mxu0 0.0
    %343 = vmatpush1.msra.mxu0 0.0
    %344 = vmatprep.subr.mxu0 0.0
    %345 = vmatpush1.msra.mxu0 0.0
    %346 = vmatprep.subr.mxu0 0.0
    %347 = vmatpush1.msra.mxu0 0.0
    %348 = vmatprep.subr.mxu0 0.0
    %349 = vmatpush1.msra.mxu0 0.0
    %350 = vmatprep.subr.mxu0 0.0
    %351 = vmatpush1.msra.mxu0 0.0
    %352 = vmatprep.subr.mxu0 0.0
    %353 = vmatpush1.msra.mxu0 0.0
    %354 = vmatprep.subr.mxu0 0.0
    %355 = vmatpush1.msra.mxu0 0.0
    %356 = vmatprep.subr.mxu0 0.0
    %357 = vmatpush1.msra.mxu0 0.0
    %358 = vmatprep.subr.mxu0 0.0
    %359 = vmatpush1.msra.mxu0 0.0
    %360 = vmatprep.subr.mxu0 0.0
    %361 = vmatpush1.msra.mxu0 0.0
    %362 = vmatprep.subr.mxu0 0.0
    %363 = vmatpush1.msra.mxu0 0.0
    %364 = vmatprep.subr.mxu0 0.0
    %365 = vmatpush1.msra.mxu0 0.0
    %366 = vmatprep.subr.mxu0 0.0
    %367 = vmatpush1.msra.mxu0 0.0
    %368 = vmatprep.subr.mxu0 0.0
    %369 = vmatpush1.msra.mxu0 0.0
    %370 = vmatprep.subr.mxu0 0.0
    %371 = vmatpush1.msra.mxu0 0.0
    %372 = vmatprep.subr.mxu0 0.0
    %373 = vmatpush1.msra.mxu0 0.0
    %374 = vmatprep.subr.mxu0 0.0
    %375 = vmatpush1.msra.mxu0 0.0
    %376 = vmatprep.subr.mxu0 0.0
    %377 = vmatpush1.msra.mxu0 0.0
    %378 = vmatprep.subr.mxu0 0.0
    %379 = vmatpush1.msra.mxu0 0.0
    %380 = vmatprep.subr.mxu0 0.0
    %381 = vmatpush1.msra.mxu0 0.0
    %382 = vmatprep.subr.mxu0 0.0
    %383 = vmatpush1.msra.mxu0 0.0
    %384 = vmatprep.subr.mxu0 0.0
    %385 = vmatpush1.msra.mxu0 0.0
    %386 = vmatprep.subr.mxu0 0.0
    %387 = vmatpush1.msra.mxu0 0.0
    %388 = vmatprep.subr.mxu0 0.0
    %389 = vmatpush1.msra.mxu0 0.0
    %390 = vmatprep.subr.mxu0 0.0
    %391 = vmatpush1.msra.mxu0 0.0
    %392 = vmatprep.subr.mxu0 0.0
    %393 = vmatpush1.msra.mxu0 0.0
    %394 = vmatprep.subr.mxu0 0.0
    %395 = vmatpush1.msra.mxu0 0.0
    %396 = vmatprep.subr.mxu0 0.0
    %397 = vmatpush1.msra.mxu0 0.0
    %398 = vmatprep.subr.mxu0 0.0
    %399 = vmatpush1.msra.mxu0 0.0
    %400 = vmatprep.subr.mxu0 0.0
    %401 = vmatpush1.msra.mxu0 0.0
    %402 = vmatprep.mubr.f32.mxu0 0.0
    %403 = vmatmul.mubr.f32.gmra.mrb[0].mxu0 %v336
    %v404 = vpop.f32.mrb[0].mxu0
    %v405 = vadd.f32 0.0, %v404
    %v406 = vpop.f32.mrb[0].mxu0
    %407 = vdwg.mxu0
    %408 = vrot.lane.b32.xlu0 %v152, 64
    %v409 = vpop.permute.xlu0 %408
    %v412 = vsel %vm158, %v331, 0
    %414 = vmatprep.subr.mxu0 0.0
    %415 = vmatpush1.msra.mxu0 %v409
    %416 = vmatprep.subr.mxu0 0.0
    %417 = vmatpush1.msra.mxu0 0.0
    %418 = vmatprep.subr.mxu0 0.0
    %419 = vmatpush1.msra.mxu0 0.0
    %420 = vmatprep.subr.mxu0 0.0
    %421 = vmatpush1.msra.mxu0 0.0
    %422 = vmatprep.subr.mxu0 0.0
    %423 = vmatpush1.msra.mxu0 0.0
    %424 = vmatprep.subr.mxu0 0.0
    %425 = vmatpush1.msra.mxu0 0.0
    %426 = vmatprep.subr.mxu0 0.0
    %427 = vmatpush1.msra.mxu0 0.0
    %428 = vmatprep.subr.mxu0 0.0
    %429 = vmatpush1.msra.mxu0 0.0
    %430 = vmatprep.subr.mxu0 0.0
    %431 = vmatpush1.msra.mxu0 0.0
    %432 = vmatprep.subr.mxu0 0.0
    %433 = vmatpush1.msra.mxu0 0.0
    %434 = vmatprep.subr.mxu0 0.0
    %435 = vmatpush1.msra.mxu0 0.0
    %436 = vmatprep.subr.mxu0 0.0
    %437 = vmatpush1.msra.mxu0 0.0
    %438 = vmatprep.subr.mxu0 0.0
    %439 = vmatpush1.msra.mxu0 0.0
    %440 = vmatprep.subr.mxu0 0.0
    %441 = vmatpush1.msra.mxu0 0.0
    %442 = vmatprep.subr.mxu0 0.0
    %443 = vmatpush1.msra.mxu0 0.0
    %444 = vmatprep.subr.mxu0 0.0
    %445 = vmatpush1.msra.mxu0 0.0
    %446 = vmatprep.subr.mxu0 0.0
    %447 = vmatpush1.msra.mxu0 0.0
    %448 = vmatprep.subr.mxu0 0.0
    %449 = vmatpush1.msra.mxu0 0.0
    %450 = vmatprep.subr.mxu0 0.0
    %451 = vmatpush1.msra.mxu0 0.0
    %452 = vmatprep.subr.mxu0 0.0
    %453 = vmatpush1.msra.mxu0 0.0
    %454 = vmatprep.subr.mxu0 0.0
    %455 = vmatpush1.msra.mxu0 0.0
    %456 = vmatprep.subr.mxu0 0.0
    %457 = vmatpush1.msra.mxu0 0.0
    %458 = vmatprep.subr.mxu0 0.0
    %459 = vmatpush1.msra.mxu0 0.0
    %460 = vmatprep.subr.mxu0 0.0
    %461 = vmatpush1.msra.mxu0 0.0
    %462 = vmatprep.subr.mxu0 0.0
    %463 = vmatpush1.msra.mxu0 0.0
    %464 = vmatprep.subr.mxu0 0.0
    %465 = vmatpush1.msra.mxu0 0.0
    %466 = vmatprep.subr.mxu0 0.0
    %467 = vmatpush1.msra.mxu0 0.0
    %468 = vmatprep.subr.mxu0 0.0
    %469 = vmatpush1.msra.mxu0 0.0
    %470 = vmatprep.subr.mxu0 0.0
    %471 = vmatpush1.msra.mxu0 0.0
    %472 = vmatprep.subr.mxu0 0.0
    %473 = vmatpush1.msra.mxu0 0.0
    %474 = vmatprep.subr.mxu0 0.0
    %475 = vmatpush1.msra.mxu0 0.0
    %476 = vmatprep.subr.mxu0 0.0
    %477 = vmatpush1.msra.mxu0 0.0
    %478 = vmatprep.mubr.f32.mxu0 0.0
    %479 = vmatmul.mubr.f32.gmra.mrb[0].mxu0 %v412
    %v480 = vpop.f32.mrb[0].mxu0
    %v481 = vadd.f32 0.0, %v480
    %v482 = vpop.f32.mrb[0].mxu0
    %483 = vdwg.mxu0
    %484 = vrot.lane.b32.xlu0 %v147, 120
    %v485 = vpop.permute.xlu0 %484
    %486 = vrot.lane.b32.xlu0 %v147, 88
    %v487 = vpop.permute.xlu0 %486
    %v488 = vsel %vm158, %v485, 0
    %v490 = vsel %vm158, %v487, 0
    %492 = vmatprep.subr.mxu0 0.0
    %493 = vmatpush1.xpose.msra.mxu0 %v490
    %494 = vmatprep.subr.mxu0 0.0
    %495 = vmatpush1.xpose.msra.mxu0 0.0
    %496 = vmatprep.subr.mxu0 0.0
    %497 = vmatpush1.xpose.msra.mxu0 0.0
    %498 = vmatprep.subr.mxu0 0.0
    %499 = vmatpush1.xpose.msra.mxu0 0.0
    %500 = vmatprep.subr.mxu0 0.0
    %501 = vmatpush1.xpose.msra.mxu0 0.0
    %502 = vmatprep.subr.mxu0 0.0
    %503 = vmatpush1.xpose.msra.mxu0 0.0
    %504 = vmatprep.subr.mxu0 0.0
    %505 = vmatpush1.xpose.msra.mxu0 0.0
    %506 = vmatprep.subr.mxu0 0.0
    %507 = vmatpush1.xpose.msra.mxu0 0.0
    %508 = vmatprep.subr.mxu0 0.0
    %509 = vmatpush1.xpose.msra.mxu0 0.0
    %510 = vmatprep.subr.mxu0 0.0
    %511 = vmatpush1.xpose.msra.mxu0 0.0
    %512 = vmatprep.subr.mxu0 0.0
    %513 = vmatpush1.xpose.msra.mxu0 0.0
    %514 = vmatprep.subr.mxu0 0.0
    %515 = vmatpush1.xpose.msra.mxu0 0.0
    %516 = vmatprep.subr.mxu0 0.0
    %517 = vmatpush1.xpose.msra.mxu0 0.0
    %518 = vmatprep.subr.mxu0 0.0
    %519 = vmatpush1.xpose.msra.mxu0 0.0
    %520 = vmatprep.subr.mxu0 0.0
    %521 = vmatpush1.xpose.msra.mxu0 0.0
    %522 = vmatprep.subr.mxu0 0.0
    %523 = vmatpush1.xpose.msra.mxu0 0.0
    %524 = vmatprep.subr.mxu0 0.0
    %525 = vmatpush1.xpose.msra.mxu0 0.0
    %526 = vmatprep.subr.mxu0 0.0
    %527 = vmatpush1.xpose.msra.mxu0 0.0
    %528 = vmatprep.subr.mxu0 0.0
    %529 = vmatpush1.xpose.msra.mxu0 0.0
    %530 = vmatprep.subr.mxu0 0.0
    %531 = vmatpush1.xpose.msra.mxu0 0.0
    %532 = vmatprep.subr.mxu0 0.0
    %533 = vmatpush1.xpose.msra.mxu0 0.0
    %534 = vmatprep.subr.mxu0 0.0
    %535 = vmatpush1.xpose.msra.mxu0 0.0
    %536 = vmatprep.subr.mxu0 0.0
    %537 = vmatpush1.xpose.msra.mxu0 0.0
    %538 = vmatprep.subr.mxu0 0.0
    %539 = vmatpush1.xpose.msra.mxu0 0.0
    %540 = vmatprep.subr.mxu0 0.0
    %541 = vmatpush1.xpose.msra.mxu0 0.0
    %542 = vmatprep.subr.mxu0 0.0
    %543 = vmatpush1.xpose.msra.mxu0 0.0
    %544 = vmatprep.subr.mxu0 0.0
    %545 = vmatpush1.xpose.msra.mxu0 0.0
    %546 = vmatprep.subr.mxu0 0.0
    %547 = vmatpush1.xpose.msra.mxu0 0.0
    %548 = vmatprep.subr.mxu0 0.0
    %549 = vmatpush1.xpose.msra.mxu0 0.0
    %550 = vmatprep.subr.mxu0 0.0
    %551 = vmatpush1.xpose.msra.mxu0 0.0
    %552 = vmatprep.subr.mxu0 0.0
    %553 = vmatpush1.xpose.msra.mxu0 0.0
    %554 = vmatprep.subr.mxu0 0.0
    %555 = vmatpush1.xpose.msra.mxu0 0.0
    %556 = vmatprep.mubr.f32.mxu0 0.0
    %557 = vmatmul.mubr.f32.gmra.mrb[0].mxu0 %v488
    %v558 = vpop.f32.mrb[0].mxu0
    %v559 = vadd.f32 0.0, %v558
    %v560 = vpop.f32.mrb[0].mxu0
    %561 = vdwg.mxu0
    %562 = vrot.lane.b32.xlu0 %v152, 120
    %v563 = vpop.permute.xlu0 %562
    %564 = vrot.lane.b32.xlu0 %v152, 88
    %v565 = vpop.permute.xlu0 %564
    %v566 = vsel %vm158, %v563, 0
    %v568 = vsel %vm158, %v565, 0
    %570 = vmatprep.subr.mxu0 0.0
    %571 = vmatpush1.xpose.msra.mxu0 %v568
    %572 = vmatprep.subr.mxu0 0.0
    %573 = vmatpush1.xpose.msra.mxu0 0.0
    %574 = vmatprep.subr.mxu0 0.0
    %575 = vmatpush1.xpose.msra.mxu0 0.0
    %576 = vmatprep.subr.mxu0 0.0
    %577 = vmatpush1.xpose.msra.mxu0 0.0
    %578 = vmatprep.subr.mxu0 0.0
    %579 = vmatpush1.xpose.msra.mxu0 0.0
    %580 = vmatprep.subr.mxu0 0.0
    %581 = vmatpush1.xpose.msra.mxu0 0.0
    %582 = vmatprep.subr.mxu0 0.0
    %583 = vmatpush1.xpose.msra.mxu0 0.0
    %584 = vmatprep.subr.mxu0 0.0
    %585 = vmatpush1.xpose.msra.mxu0 0.0
    %586 = vmatprep.subr.mxu0 0.0
    %587 = vmatpush1.xpose.msra.mxu0 0.0
    %588 = vmatprep.subr.mxu0 0.0
    %589 = vmatpush1.xpose.msra.mxu0 0.0
    %590 = vmatprep.subr.mxu0 0.0
    %591 = vmatpush1.xpose.msra.mxu0 0.0
    %592 = vmatprep.subr.mxu0 0.0
    %593 = vmatpush1.xpose.msra.mxu0 0.0
    %594 = vmatprep.subr.mxu0 0.0
    %595 = vmatpush1.xpose.msra.mxu0 0.0
    %596 = vmatprep.subr.mxu0 0.0
    %597 = vmatpush1.xpose.msra.mxu0 0.0
    %598 = vmatprep.subr.mxu0 0.0
    %599 = vmatpush1.xpose.msra.mxu0 0.0
    %600 = vmatprep.subr.mxu0 0.0
    %601 = vmatpush1.xpose.msra.mxu0 0.0
    %602 = vmatprep.subr.mxu0 0.0
    %603 = vmatpush1.xpose.msra.mxu0 0.0
    %604 = vmatprep.subr.mxu0 0.0
    %605 = vmatpush1.xpose.msra.mxu0 0.0
    %606 = vmatprep.subr.mxu0 0.0
    %607 = vmatpush1.xpose.msra.mxu0 0.0
    %608 = vmatprep.subr.mxu0 0.0
    %609 = vmatpush1.xpose.msra.mxu0 0.0
    %610 = vmatprep.subr.mxu0 0.0
    %611 = vmatpush1.xpose.msra.mxu0 0.0
    %612 = vmatprep.subr.mxu0 0.0
    %613 = vmatpush1.xpose.msra.mxu0 0.0
    %614 = vmatprep.subr.mxu0 0.0
    %615 = vmatpush1.xpose.msra.mxu0 0.0
    %616 = vmatprep.subr.mxu0 0.0
    %617 = vmatpush1.xpose.msra.mxu0 0.0
    %618 = vmatprep.subr.mxu0 0.0
    %619 = vmatpush1.xpose.msra.mxu0 0.0
    %620 = vmatprep.subr.mxu0 0.0
    %621 = vmatpush1.xpose.msra.mxu0 0.0
    %622 = vmatprep.subr.mxu0 0.0
    %623 = vmatpush1.xpose.msra.mxu0 0.0
    %624 = vmatprep.subr.mxu0 0.0
    %625 = vmatpush1.xpose.msra.mxu0 0.0
    %626 = vmatprep.subr.mxu0 0.0
    %627 = vmatpush1.xpose.msra.mxu0 0.0
    %628 = vmatprep.subr.mxu0 0.0
    %629 = vmatpush1.xpose.msra.mxu0 0.0
    %630 = vmatprep.subr.mxu0 0.0
    %631 = vmatpush1.xpose.msra.mxu0 0.0
    %632 = vmatprep.subr.mxu0 0.0
    %633 = vmatpush1.xpose.msra.mxu0 0.0
    %634 = vmatprep.mubr.f32.mxu0 0.0
    %635 = vmatmul.mubr.f32.gmra.mrb[0].mxu0 %v566
    %v636 = vpop.f32.mrb[0].mxu0
    %v637 = vadd.f32 0.0, %v636
    %v638 = vpop.f32.mrb[0].mxu0
    %639 = vdwg.mxu0
    %v640 = vsel %vm158, %v559, -inf
    %641 = vmax.xlane.f32.xlu0 %v640
    %v642 = vpop.xlane.xlu0 %641
    %v643 = vsel %vm158, %v637, -inf
    %644 = vmax.xlane.f32.xlu0 %v643
    %v645 = vpop.xlane.xlu0 %644
    %v646 = vsub.f32 %v559, %v642
    %v647 = vsub.f32 %v637, %v645
    %v648 = vmul.f32 %v646, 1.442695
    %v649 = vpow.pop %v648
    %v650 = vmul.f32 %v647, 1.442695
    %v651 = vpow.pop %v650
    %v652 = vsel %vm158, %v649, 0.0
    %653 = vadd.xlane.f32.xlu0 %v652
    %v654 = vpop.xlane.xlu0 %653
    %v655 = vsel %vm158, %v651, 0.0
    %656 = vadd.xlane.f32.xlu0 %v655
    %v657 = vpop.xlane.xlu0 %656
    %v658 = vrcp.pop %v654
    %v659 = vmul.f32 %v649, %v658
    %v660 = vrcp.pop %v657
    %v661 = vmul.f32 %v651, %v660
    %662 = vrot.lane.b32.xlu0 %v147, 56
    %v663 = vpop.permute.xlu0 %662
    %v666 = vsel %vm158, %v659, 0
    %668 = vmatprep.subr.mxu0 0.0
    %669 = vmatpush1.msra.mxu0 %v663
    %670 = vmatprep.subr.mxu0 0.0
    %671 = vmatpush1.msra.mxu0 0.0
    %672 = vmatprep.subr.mxu0 0.0
    %673 = vmatpush1.msra.mxu0 0.0
    %674 = vmatprep.subr.mxu0 0.0
    %675 = vmatpush1.msra.mxu0 0.0
    %676 = vmatprep.subr.mxu0 0.0
    %677 = vmatpush1.msra.mxu0 0.0
    %678 = vmatprep.subr.mxu0 0.0
    %679 = vmatpush1.msra.mxu0 0.0
    %680 = vmatprep.subr.mxu0 0.0
    %681 = vmatpush1.msra.mxu0 0.0
    %682 = vmatprep.subr.mxu0 0.0
    %683 = vmatpush1.msra.mxu0 0.0
    %684 = vmatprep.subr.mxu0 0.0
    %685 = vmatpush1.msra.mxu0 0.0
    %686 = vmatprep.subr.mxu0 0.0
    %687 = vmatpush1.msra.mxu0 0.0
    %688 = vmatprep.subr.mxu0 0.0
    %689 = vmatpush1.msra.mxu0 0.0
    %690 = vmatprep.subr.mxu0 0.0
    %691 = vmatpush1.msra.mxu0 0.0
    %692 = vmatprep.subr.mxu0 0.0
    %693 = vmatpush1.msra.mxu0 0.0
    %694 = vmatprep.subr.mxu0 0.0
    %695 = vmatpush1.msra.mxu0 0.0
    %696 = vmatprep.subr.mxu0 0.0
    %697 = vmatpush1.msra.mxu0 0.0
    %698 = vmatprep.subr.mxu0 0.0
    %699 = vmatpush1.msra.mxu0 0.0
    %700 = vmatprep.subr.mxu0 0.0
    %701 = vmatpush1.msra.mxu0 0.0
    %702 = vmatprep.subr.mxu0 0.0
    %703 = vmatpush1.msra.mxu0 0.0
    %704 = vmatprep.subr.mxu0 0.0
    %705 = vmatpush1.msra.mxu0 0.0
    %706 = vmatprep.subr.mxu0 0.0
    %707 = vmatpush1.msra.mxu0 0.0
    %708 = vmatprep.subr.mxu0 0.0
    %709 = vmatpush1.msra.mxu0 0.0
    %710 = vmatprep.subr.mxu0 0.0
    %711 = vmatpush1.msra.mxu0 0.0
    %712 = vmatprep.subr.mxu0 0.0
    %713 = vmatpush1.msra.mxu0 0.0
    %714 = vmatprep.subr.mxu0 0.0
    %715 = vmatpush1.msra.mxu0 0.0
    %716 = vmatprep.subr.mxu0 0.0
    %717 = vmatpush1.msra.mxu0 0.0
    %718 = vmatprep.subr.mxu0 0.0
    %719 = vmatpush1.msra.mxu0 0.0
    %720 = vmatprep.subr.mxu0 0.0
    %721 = vmatpush1.msra.mxu0 0.0
    %722 = vmatprep.subr.mxu0 0.0
    %723 = vmatpush1.msra.mxu0 0.0
    %724 = vmatprep.subr.mxu0 0.0
    %725 = vmatpush1.msra.mxu0 0.0
    %726 = vmatprep.subr.mxu0 0.0
    %727 = vmatpush1.msra.mxu0 0.0
    %728 = vmatprep.subr.mxu0 0.0
    %729 = vmatpush1.msra.mxu0 0.0
    %730 = vmatprep.subr.mxu0 0.0
    %731 = vmatpush1.msra.mxu0 0.0
    %732 = vmatprep.mubr.f32.mxu0 0.0
    %733 = vmatmul.mubr.f32.gmra.mrb[0].mxu0 %v666
    %v734 = vpop.f32.mrb[0].mxu0
    %v735 = vadd.f32 0.0, %v734
    %v736 = vpop.f32.mrb[0].mxu0
    %737 = vdwg.mxu0
    %738 = vrot.lane.b32.xlu0 %v152, 56
    %v739 = vpop.permute.xlu0 %738
    %v742 = vsel %vm158, %v661, 0
    %744 = vmatprep.subr.mxu0 0.0
    %745 = vmatpush1.msra.mxu0 %v739
    %746 = vmatprep.subr.mxu0 0.0
    %747 = vmatpush1.msra.mxu0 0.0
    %748 = vmatprep.subr.mxu0 0.0
    %749 = vmatpush1.msra.mxu0 0.0
    %750 = vmatprep.subr.mxu0 0.0
    %751 = vmatpush1.msra.mxu0 0.0
    %752 = vmatprep.subr.mxu0 0.0
    %753 = vmatpush1.msra.mxu0 0.0
    %754 = vmatprep.subr.mxu0 0.0
    %755 = vmatpush1.msra.mxu0 0.0
    %756 = vmatprep.subr.mxu0 0.0
    %757 = vmatpush1.msra.mxu0 0.0
    %758 = vmatprep.subr.mxu0 0.0
    %759 = vmatpush1.msra.mxu0 0.0
    %760 = vmatprep.subr.mxu0 0.0
    %761 = vmatpush1.msra.mxu0 0.0
    %762 = vmatprep.subr.mxu0 0.0
    %763 = vmatpush1.msra.mxu0 0.0
    %764 = vmatprep.subr.mxu0 0.0
    %765 = vmatpush1.msra.mxu0 0.0
    %766 = vmatprep.subr.mxu0 0.0
    %767 = vmatpush1.msra.mxu0 0.0
    %768 = vmatprep.subr.mxu0 0.0
    %769 = vmatpush1.msra.mxu0 0.0
    %770 = vmatprep.subr.mxu0 0.0
    %771 = vmatpush1.msra.mxu0 0.0
    %772 = vmatprep.subr.mxu0 0.0
    %773 = vmatpush1.msra.mxu0 0.0
    %774 = vmatprep.subr.mxu0 0.0
    %775 = vmatpush1.msra.mxu0 0.0
    %776 = vmatprep.subr.mxu0 0.0
    %777 = vmatpush1.msra.mxu0 0.0
    %778 = vmatprep.subr.mxu0 0.0
    %779 = vmatpush1.msra.mxu0 0.0
    %780 = vmatprep.subr.mxu0 0.0
    %781 = vmatpush1.msra.mxu0 0.0
    %782 = vmatprep.subr.mxu0 0.0
    %783 = vmatpush1.msra.mxu0 0.0
    %784 = vmatprep.subr.mxu0 0.0
    %785 = vmatpush1.msra.mxu0 0.0
    %786 = vmatprep.subr.mxu0 0.0
    %787 = vmatpush1.msra.mxu0 0.0
    %788 = vmatprep.subr.mxu0 0.0
    %789 = vmatpush1.msra.mxu0 0.0
    %790 = vmatprep.subr.mxu0 0.0
    %791 = vmatpush1.msra.mxu0 0.0
    %792 = vmatprep.subr.mxu0 0.0
    %793 = vmatpush1.msra.mxu0 0.0
    %794 = vmatprep.subr.mxu0 0.0
    %795 = vmatpush1.msra.mxu0 0.0
    %796 = vmatprep.subr.mxu0 0.0
    %797 = vmatpush1.msra.mxu0 0.0
    %798 = vmatprep.subr.mxu0 0.0
    %799 = vmatpush1.msra.mxu0 0.0
    %800 = vmatprep.subr.mxu0 0.0
    %801 = vmatpush1.msra.mxu0 0.0
    %802 = vmatprep.subr.mxu0 0.0
    %803 = vmatpush1.msra.mxu0 0.0
    %804 = vmatprep.subr.mxu0 0.0
    %805 = vmatpush1.msra.mxu0 0.0
    %806 = vmatprep.subr.mxu0 0.0
    %807 = vmatpush1.msra.mxu0 0.0
    %808 = vmatprep.mubr.f32.mxu0 0.0
    %809 = vmatmul.mubr.f32.gmra.mrb[0].mxu0 %v742
    %v810 = vpop.f32.mrb[0].mxu0
    %v811 = vadd.f32 0.0, %v810
    %v812 = vpop.f32.mrb[0].mxu0
    %813 = vdwg.mxu0
    %814 = vrot.lane.b32.xlu0 %v147, 112
    %v815 = vpop.permute.xlu0 %814
    %816 = vrot.lane.b32.xlu0 %v147, 80
    %v817 = vpop.permute.xlu0 %816
    %v818 = vsel %vm158, %v815, 0
    %v820 = vsel %vm158, %v817, 0
    %822 = vmatprep.subr.mxu0 0.0
    %823 = vmatpush1.xpose.msra.mxu0 %v820
    %824 = vmatprep.subr.mxu0 0.0
    %825 = vmatpush1.xpose.msra.mxu0 0.0
    %826 = vmatprep.subr.mxu0 0.0
    %827 = vmatpush1.xpose.msra.mxu0 0.0
    %828 = vmatprep.subr.mxu0 0.0
    %829 = vmatpush1.xpose.msra.mxu0 0.0
    %830 = vmatprep.subr.mxu0 0.0
    %831 = vmatpush1.xpose.msra.mxu0 0.0
    %832 = vmatprep.subr.mxu0 0.0
    %833 = vmatpush1.xpose.msra.mxu0 0.0
    %834 = vmatprep.subr.mxu0 0.0
    %835 = vmatpush1.xpose.msra.mxu0 0.0
    %836 = vmatprep.subr.mxu0 0.0
    %837 = vmatpush1.xpose.msra.mxu0 0.0
    %838 = vmatprep.subr.mxu0 0.0
    %839 = vmatpush1.xpose.msra.mxu0 0.0
    %840 = vmatprep.subr.mxu0 0.0
    %841 = vmatpush1.xpose.msra.mxu0 0.0
    %842 = vmatprep.subr.mxu0 0.0
    %843 = vmatpush1.xpose.msra.mxu0 0.0
    %844 = vmatprep.subr.mxu0 0.0
    %845 = vmatpush1.xpose.msra.mxu0 0.0
    %846 = vmatprep.subr.mxu0 0.0
    %847 = vmatpush1.xpose.msra.mxu0 0.0
    %848 = vmatprep.subr.mxu0 0.0
    %849 = vmatpush1.xpose.msra.mxu0 0.0
    %850 = vmatprep.subr.mxu0 0.0
    %851 = vmatpush1.xpose.msra.mxu0 0.0
    %852 = vmatprep.subr.mxu0 0.0
    %853 = vmatpush1.xpose.msra.mxu0 0.0
    %854 = vmatprep.subr.mxu0 0.0
    %855 = vmatpush1.xpose.msra.mxu0 0.0
    %856 = vmatprep.subr.mxu0 0.0
    %857 = vmatpush1.xpose.msra.mxu0 0.0
    %858 = vmatprep.subr.mxu0 0.0
    %859 = vmatpush1.xpose.msra.mxu0 0.0
    %860 = vmatprep.subr.mxu0 0.0
    %861 = vmatpush1.xpose.msra.mxu0 0.0
    %862 = vmatprep.subr.mxu0 0.0
    %863 = vmatpush1.xpose.msra.mxu0 0.0
    %864 = vmatprep.subr.mxu0 0.0
    %865 = vmatpush1.xpose.msra.mxu0 0.0
    %866 = vmatprep.subr.mxu0 0.0
    %867 = vmatpush1.xpose.msra.mxu0 0.0
    %868 = vmatprep.subr.mxu0 0.0
    %869 = vmatpush1.xpose.msra.mxu0 0.0
    %870 = vmatprep.subr.mxu0 0.0
    %871 = vmatpush1.xpose.msra.mxu0 0.0
    %872 = vmatprep.subr.mxu0 0.0
    %873 = vmatpush1.xpose.msra.mxu0 0.0
    %874 = vmatprep.subr.mxu0 0.0
    %875 = vmatpush1.xpose.msra.mxu0 0.0
    %876 = vmatprep.subr.mxu0 0.0
    %877 = vmatpush1.xpose.msra.mxu0 0.0
    %878 = vmatprep.subr.mxu0 0.0
    %879 = vmatpush1.xpose.msra.mxu0 0.0
    %880 = vmatprep.subr.mxu0 0.0
    %881 = vmatpush1.xpose.msra.mxu0 0.0
    %882 = vmatprep.subr.mxu0 0.0
    %883 = vmatpush1.xpose.msra.mxu0 0.0
    %884 = vmatprep.subr.mxu0 0.0
    %885 = vmatpush1.xpose.msra.mxu0 0.0
    %886 = vmatprep.mubr.f32.mxu0 0.0
    %887 = vmatmul.mubr.f32.gmra.mrb[0].mxu0 %v818
    %v888 = vpop.f32.mrb[0].mxu0
    %v889 = vadd.f32 0.0, %v888
    %v890 = vpop.f32.mrb[0].mxu0
    %891 = vdwg.mxu0
    %892 = vrot.lane.b32.xlu0 %v152, 112
    %v893 = vpop.permute.xlu0 %892
    %894 = vrot.lane.b32.xlu0 %v152, 80
    %v895 = vpop.permute.xlu0 %894
    %v896 = vsel %vm158, %v893, 0
    %v898 = vsel %vm158, %v895, 0
    %900 = vmatprep.subr.mxu0 0.0
    %901 = vmatpush1.xpose.msra.mxu0 %v898
    %902 = vmatprep.subr.mxu0 0.0
    %903 = vmatpush1.xpose.msra.mxu0 0.0
    %904 = vmatprep.subr.mxu0 0.0
    %905 = vmatpush1.xpose.msra.mxu0 0.0
    %906 = vmatprep.subr.mxu0 0.0
    %907 = vmatpush1.xpose.msra.mxu0 0.0
    %908 = vmatprep.subr.mxu0 0.0
    %909 = vmatpush1.xpose.msra.mxu0 0.0
    %910 = vmatprep.subr.mxu0 0.0
    %911 = vmatpush1.xpose.msra.mxu0 0.0
    %912 = vmatprep.subr.mxu0 0.0
    %913 = vmatpush1.xpose.msra.mxu0 0.0
    %914 = vmatprep.subr.mxu0 0.0
    %915 = vmatpush1.xpose.msra.mxu0 0.0
    %916 = vmatprep.subr.mxu0 0.0
    %917 = vmatpush1.xpose.msra.mxu0 0.0
    %918 = vmatprep.subr.mxu0 0.0
    %919 = vmatpush1.xpose.msra.mxu0 0.0
    %920 = vmatprep.subr.mxu0 0.0
    %921 = vmatpush1.xpose.msra.mxu0 0.0
    %922 = vmatprep.subr.mxu0 0.0
    %923 = vmatpush1.xpose.msra.mxu0 0.0
    %924 = vmatprep.subr.mxu0 0.0
    %925 = vmatpush1.xpose.msra.mxu0 0.0
    %926 = vmatprep.subr.mxu0 0.0
    %927 = vmatpush1.xpose.msra.mxu0 0.0
    %928 = vmatprep.subr.mxu0 0.0
    %929 = vmatpush1.xpose.msra.mxu0 0.0
    %930 = vmatprep.subr.mxu0 0.0
    %931 = vmatpush1.xpose.msra.mxu0 0.0
    %932 = vmatprep.subr.mxu0 0.0
    %933 = vmatpush1.xpose.msra.mxu0 0.0
    %934 = vmatprep.subr.mxu0 0.0
    %935 = vmatpush1.xpose.msra.mxu0 0.0
    %936 = vmatprep.subr.mxu0 0.0
    %937 = vmatpush1.xpose.msra.mxu0 0.0
    %938 = vmatprep.subr.mxu0 0.0
    %939 = vmatpush1.xpose.msra.mxu0 0.0
    %940 = vmatprep.subr.mxu0 0.0
    %941 = vmatpush1.xpose.msra.mxu0 0.0
    %942 = vmatprep.subr.mxu0 0.0
    %943 = vmatpush1.xpose.msra.mxu0 0.0
    %944 = vmatprep.subr.mxu0 0.0
    %945 = vmatpush1.xpose.msra.mxu0 0.0
    %946 = vmatprep.subr.mxu0 0.0
    %947 = vmatpush1.xpose.msra.mxu0 0.0
    %948 = vmatprep.subr.mxu0 0.0
    %949 = vmatpush1.xpose.msra.mxu0 0.0
    %950 = vmatprep.subr.mxu0 0.0
    %951 = vmatpush1.xpose.msra.mxu0 0.0
    %952 = vmatprep.subr.mxu0 0.0
    %953 = vmatpush1.xpose.msra.mxu0 0.0
    %954 = vmatprep.subr.mxu0 0.0
    %955 = vmatpush1.xpose.msra.mxu0 0.0
    %956 = vmatprep.subr.mxu0 0.0
    %957 = vmatpush1.xpose.msra.mxu0 0.0
    %958 = vmatprep.subr.mxu0 0.0
    %959 = vmatpush1.xpose.msra.mxu0 0.0
    %960 = vmatprep.subr.mxu0 0.0
    %961 = vmatpush1.xpose.msra.mxu0 0.0
    %962 = vmatprep.subr.mxu0 0.0
    %963 = vmatpush1.xpose.msra.mxu0 0.0
    %964 = vmatprep.mubr.f32.mxu0 0.0
    %965 = vmatmul.mubr.f32.gmra.mrb[0].mxu0 %v896
    %v966 = vpop.f32.mrb[0].mxu0
    %v967 = vadd.f32 0.0, %v966
    %v968 = vpop.f32.mrb[0].mxu0
    %969 = vdwg.mxu0
    %v970 = vsel %vm158, %v889, -inf
    %971 = vmax.xlane.f32.xlu0 %v970
    %v972 = vpop.xlane.xlu0 %971
    %v973 = vsel %vm158, %v967, -inf
    %974 = vmax.xlane.f32.xlu0 %v973
    %v975 = vpop.xlane.xlu0 %974
    %v976 = vsub.f32 %v889, %v972
    %v977 = vsub.f32 %v967, %v975
    %v978 = vmul.f32 %v976, 1.442695
    %v979 = vpow.pop %v978
    %v980 = vmul.f32 %v977, 1.442695
    %v981 = vpow.pop %v980
    %v982 = vsel %vm158, %v979, 0.0
    %983 = vadd.xlane.f32.xlu0 %v982
    %v984 = vpop.xlane.xlu0 %983
    %v985 = vsel %vm158, %v981, 0.0
    %986 = vadd.xlane.f32.xlu0 %v985
    %v987 = vpop.xlane.xlu0 %986
    %v988 = vrcp.pop %v984
    %v989 = vmul.f32 %v979, %v988
    %v990 = vrcp.pop %v987
    %v991 = vmul.f32 %v981, %v990
    %992 = vrot.lane.b32.xlu0 %v147, 48
    %v993 = vpop.permute.xlu0 %992
    %v996 = vsel %vm158, %v989, 0
    %998 = vmatprep.subr.mxu0 0.0
    %999 = vmatpush1.msra.mxu0 %v993
    %1000 = vmatprep.subr.mxu0 0.0
    %1001 = vmatpush1.msra.mxu0 0.0
    %1002 = vmatprep.subr.mxu0 0.0
    %1003 = vmatpush1.msra.mxu0 0.0
    %1004 = vmatprep.subr.mxu0 0.0
    %1005 = vmatpush1.msra.mxu0 0.0
    %1006 = vmatprep.subr.mxu0 0.0
    %1007 = vmatpush1.msra.mxu0 0.0
    %1008 = vmatprep.subr.mxu0 0.0
    %1009 = vmatpush1.msra.mxu0 0.0
    %1010 = vmatprep.subr.mxu0 0.0
    %1011 = vmatpush1.msra.mxu0 0.0
    %1012 = vmatprep.subr.mxu0 0.0
    %1013 = vmatpush1.msra.mxu0 0.0
    %1014 = vmatprep.subr.mxu0 0.0
    %1015 = vmatpush1.msra.mxu0 0.0
    %1016 = vmatprep.subr.mxu0 0.0
    %1017 = vmatpush1.msra.mxu0 0.0
    %1018 = vmatprep.subr.mxu0 0.0
    %1019 = vmatpush1.msra.mxu0 0.0
    %1020 = vmatprep.subr.mxu0 0.0
    %1021 = vmatpush1.msra.mxu0 0.0
    %1022 = vmatprep.subr.mxu0 0.0
    %1023 = vmatpush1.msra.mxu0 0.0
    %1024 = vmatprep.subr.mxu0 0.0
    %1025 = vmatpush1.msra.mxu0 0.0
    %1026 = vmatprep.subr.mxu0 0.0
    %1027 = vmatpush1.msra.mxu0 0.0
    %1028 = vmatprep.subr.mxu0 0.0
    %1029 = vmatpush1.msra.mxu0 0.0
    %1030 = vmatprep.subr.mxu0 0.0
    %1031 = vmatpush1.msra.mxu0 0.0
    %1032 = vmatprep.subr.mxu0 0.0
    %1033 = vmatpush1.msra.mxu0 0.0
    %1034 = vmatprep.subr.mxu0 0.0
    %1035 = vmatpush1.msra.mxu0 0.0
    %1036 = vmatprep.subr.mxu0 0.0
    %1037 = vmatpush1.msra.mxu0 0.0
    %1038 = vmatprep.subr.mxu0 0.0
    %1039 = vmatpush1.msra.mxu0 0.0
    %1040 = vmatprep.subr.mxu0 0.0
    %1041 = vmatpush1.msra.mxu0 0.0
    %1042 = vmatprep.subr.mxu0 0.0
    %1043 = vmatpush1.msra.mxu0 0.0
    %1044 = vmatprep.subr.mxu0 0.0
    %1045 = vmatpush1.msra.mxu0 0.0
    %1046 = vmatprep.subr.mxu0 0.0
    %1047 = vmatpush1.msra.mxu0 0.0
    %1048 = vmatprep.subr.mxu0 0.0
    %1049 = vmatpush1.msra.mxu0 0.0
    %1050 = vmatprep.subr.mxu0 0.0
    %1051 = vmatpush1.msra.mxu0 0.0
    %1052 = vmatprep.subr.mxu0 0.0
    %1053 = vmatpush1.msra.mxu0 0.0
    %1054 = vmatprep.subr.mxu0 0.0
    %1055 = vmatpush1.msra.mxu0 0.0
    %1056 = vmatprep.subr.mxu0 0.0
    %1057 = vmatpush1.msra.mxu0 0.0
    %1058 = vmatprep.subr.mxu0 0.0
    %1059 = vmatpush1.msra.mxu0 0.0
    %1060 = vmatprep.subr.mxu0 0.0
    %1061 = vmatpush1.msra.mxu0 0.0
    %1062 = vmatprep.mubr.f32.mxu0 0.0
    %1063 = vmatmul.mubr.f32.gmra.mrb[0].mxu0 %v996
    %v1064 = vpop.f32.mrb[0].mxu0
    %v1065 = vadd.f32 0.0, %v1064
    %v1066 = vpop.f32.mrb[0].mxu0
    %1067 = vdwg.mxu0
    %1068 = vrot.lane.b32.xlu0 %v152, 48
    %v1069 = vpop.permute.xlu0 %1068
    %v1072 = vsel %vm158, %v991, 0
    %1074 = vmatprep.subr.mxu0 0.0
    %1075 = vmatpush1.msra.mxu0 %v1069
    %1076 = vmatprep.subr.mxu0 0.0
    %1077 = vmatpush1.msra.mxu0 0.0
    %1078 = vmatprep.subr.mxu0 0.0
    %1079 = vmatpush1.msra.mxu0 0.0
    %1080 = vmatprep.subr.mxu0 0.0
    %1081 = vmatpush1.msra.mxu0 0.0
    %1082 = vmatprep.subr.mxu0 0.0
    %1083 = vmatpush1.msra.mxu0 0.0
    %1084 = vmatprep.subr.mxu0 0.0
    %1085 = vmatpush1.msra.mxu0 0.0
    %1086 = vmatprep.subr.mxu0 0.0
    %1087 = vmatpush1.msra.mxu0 0.0
    %1088 = vmatprep.subr.mxu0 0.0
    %1089 = vmatpush1.msra.mxu0 0.0
    %1090 = vmatprep.subr.mxu0 0.0
    %1091 = vmatpush1.msra.mxu0 0.0
    %1092 = vmatprep.subr.mxu0 0.0
    %1093 = vmatpush1.msra.mxu0 0.0
    %1094 = vmatprep.subr.mxu0 0.0
    %1095 = vmatpush1.msra.mxu0 0.0
    %1096 = vmatprep.subr.mxu0 0.0
    %1097 = vmatpush1.msra.mxu0 0.0
    %1098 = vmatprep.subr.mxu0 0.0
    %1099 = vmatpush1.msra.mxu0 0.0
    %1100 = vmatprep.subr.mxu0 0.0
    %1101 = vmatpush1.msra.mxu0 0.0
    %1102 = vmatprep.subr.mxu0 0.0
    %1103 = vmatpush1.msra.mxu0 0.0
    %1104 = vmatprep.subr.mxu0 0.0
    %1105 = vmatpush1.msra.mxu0 0.0
    %1106 = vmatprep.subr.mxu0 0.0
    %1107 = vmatpush1.msra.mxu0 0.0
    %1108 = vmatprep.subr.mxu0 0.0
    %1109 = vmatpush1.msra.mxu0 0.0
    %1110 = vmatprep.subr.mxu0 0.0
    %1111 = vmatpush1.msra.mxu0 0.0
    %1112 = vmatprep.subr.mxu0 0.0
    %1113 = vmatpush1.msra.mxu0 0.0
    %1114 = vmatprep.subr.mxu0 0.0
    %1115 = vmatpush1.msra.mxu0 0.0
    %1116 = vmatprep.subr.mxu0 0.0
    %1117 = vmatpush1.msra.mxu0 0.0
    %1118 = vmatprep.subr.mxu0 0.0
    %1119 = vmatpush1.msra.mxu0 0.0
    %1120 = vmatprep.subr.mxu0 0.0
    %1121 = vmatpush1.msra.mxu0 0.0
    %1122 = vmatprep.subr.mxu0 0.0
    %1123 = vmatpush1.msra.mxu0 0.0
    %1124 = vmatprep.subr.mxu0 0.0
    %1125 = vmatpush1.msra.mxu0 0.0
    %1126 = vmatprep.subr.mxu0 0.0
    %1127 = vmatpush1.msra.mxu0 0.0
    %1128 = vmatprep.subr.mxu0 0.0
    %1129 = vmatpush1.msra.mxu0 0.0
    %1130 = vmatprep.subr.mxu0 0.0
    %1131 = vmatpush1.msra.mxu0 0.0
    %1132 = vmatprep.subr.mxu0 0.0
    %1133 = vmatpush1.msra.mxu0 0.0
    %1134 = vmatprep.subr.mxu0 0.0
    %1135 = vmatpush1.msra.mxu0 0.0
    %1136 = vmatprep.subr.mxu0 0.0
    %1137 = vmatpush1.msra.mxu0 0.0
    %1138 = vmatprep.mubr.f32.mxu0 0.0
    %1139 = vmatmul.mubr.f32.gmra.mrb[0].mxu0 %v1072
    %v1140 = vpop.f32.mrb[0].mxu0
    %v1141 = vadd.f32 0.0, %v1140
    %v1142 = vpop.f32.mrb[0].mxu0
    %1143 = vdwg.mxu0
    %1144 = vrot.lane.b32.xlu0 %v147, 104
    %v1145 = vpop.permute.xlu0 %1144
    %1146 = vrot.lane.b32.xlu0 %v147, 72
    %v1147 = vpop.permute.xlu0 %1146
    %v1148 = vsel %vm158, %v1145, 0
    %v1150 = vsel %vm158, %v1147, 0
    %1152 = vmatprep.subr.mxu0 0.0
    %1153 = vmatpush1.xpose.msra.mxu0 %v1150
    %1154 = vmatprep.subr.mxu0 0.0
    %1155 = vmatpush1.xpose.msra.mxu0 0.0
    %1156 = vmatprep.subr.mxu0 0.0
    %1157 = vmatpush1.xpose.msra.mxu0 0.0
    %1158 = vmatprep.subr.mxu0 0.0
    %1159 = vmatpush1.xpose.msra.mxu0 0.0
    %1160 = vmatprep.subr.mxu0 0.0
    %1161 = vmatpush1.xpose.msra.mxu0 0.0
    %1162 = vmatprep.subr.mxu0 0.0
    %1163 = vmatpush1.xpose.msra.mxu0 0.0
    %1164 = vmatprep.subr.mxu0 0.0
    %1165 = vmatpush1.xpose.msra.mxu0 0.0
    %1166 = vmatprep.subr.mxu0 0.0
    %1167 = vmatpush1.xpose.msra.mxu0 0.0
    %1168 = vmatprep.subr.mxu0 0.0
    %1169 = vmatpush1.xpose.msra.mxu0 0.0
    %1170 = vmatprep.subr.mxu0 0.0
    %1171 = vmatpush1.xpose.msra.mxu0 0.0
    %1172 = vmatprep.subr.mxu0 0.0
    %1173 = vmatpush1.xpose.msra.mxu0 0.0
    %1174 = vmatprep.subr.mxu0 0.0
    %1175 = vmatpush1.xpose.msra.mxu0 0.0
    %1176 = vmatprep.subr.mxu0 0.0
    %1177 = vmatpush1.xpose.msra.mxu0 0.0
    %1178 = vmatprep.subr.mxu0 0.0
    %1179 = vmatpush1.xpose.msra.mxu0 0.0
    %1180 = vmatprep.subr.mxu0 0.0
    %1181 = vmatpush1.xpose.msra.mxu0 0.0
    %1182 = vmatprep.subr.mxu0 0.0
    %1183 = vmatpush1.xpose.msra.mxu0 0.0
    %1184 = vmatprep.subr.mxu0 0.0
    %1185 = vmatpush1.xpose.msra.mxu0 0.0
    %1186 = vmatprep.subr.mxu0 0.0
    %1187 = vmatpush1.xpose.msra.mxu0 0.0
    %1188 = vmatprep.subr.mxu0 0.0
    %1189 = vmatpush1.xpose.msra.mxu0 0.0
    %1190 = vmatprep.subr.mxu0 0.0
    %1191 = vmatpush1.xpose.msra.mxu0 0.0
    %1192 = vmatprep.subr.mxu0 0.0
    %1193 = vmatpush1.xpose.msra.mxu0 0.0
    %1194 = vmatprep.subr.mxu0 0.0
    %1195 = vmatpush1.xpose.msra.mxu0 0.0
    %1196 = vmatprep.subr.mxu0 0.0
    %1197 = vmatpush1.xpose.msra.mxu0 0.0
    %1198 = vmatprep.subr.mxu0 0.0
    %1199 = vmatpush1.xpose.msra.mxu0 0.0
    %1200 = vmatprep.subr.mxu0 0.0
    %1201 = vmatpush1.xpose.msra.mxu0 0.0
    %1202 = vmatprep.subr.mxu0 0.0
    %1203 = vmatpush1.xpose.msra.mxu0 0.0
    %1204 = vmatprep.subr.mxu0 0.0
    %1205 = vmatpush1.xpose.msra.mxu0 0.0
    %1206 = vmatprep.subr.mxu0 0.0
    %1207 = vmatpush1.xpose.msra.mxu0 0.0
    %1208 = vmatprep.subr.mxu0 0.0
    %1209 = vmatpush1.xpose.msra.mxu0 0.0
    %1210 = vmatprep.subr.mxu0 0.0
    %1211 = vmatpush1.xpose.msra.mxu0 0.0
    %1212 = vmatprep.subr.mxu0 0.0
    %1213 = vmatpush1.xpose.msra.mxu0 0.0
    %1214 = vmatprep.subr.mxu0 0.0
    %1215 = vmatpush1.xpose.msra.mxu0 0.0
    %1216 = vmatprep.mubr.f32.mxu0 0.0
    %1217 = vmatmul.mubr.f32.gmra.mrb[0].mxu0 %v1148
    %v1218 = vpop.f32.mrb[0].mxu0
    %v1219 = vadd.f32 0.0, %v1218
    %v1220 = vpop.f32.mrb[0].mxu0
    %1221 = vdwg.mxu0
    %1222 = vrot.lane.b32.xlu0 %v152, 104
    %v1223 = vpop.permute.xlu0 %1222
    %1224 = vrot.lane.b32.xlu0 %v152, 72
    %v1225 = vpop.permute.xlu0 %1224
    %v1226 = vsel %vm158, %v1223, 0
    %v1228 = vsel %vm158, %v1225, 0
    %1230 = vmatprep.subr.mxu0 0.0
    %1231 = vmatpush1.xpose.msra.mxu0 %v1228
    %1232 = vmatprep.subr.mxu0 0.0
    %1233 = vmatpush1.xpose.msra.mxu0 0.0
    %1234 = vmatprep.subr.mxu0 0.0
    %1235 = vmatpush1.xpose.msra.mxu0 0.0
    %1236 = vmatprep.subr.mxu0 0.0
    %1237 = vmatpush1.xpose.msra.mxu0 0.0
    %1238 = vmatprep.subr.mxu0 0.0
    %1239 = vmatpush1.xpose.msra.mxu0 0.0
    %1240 = vmatprep.subr.mxu0 0.0
    %1241 = vmatpush1.xpose.msra.mxu0 0.0
    %1242 = vmatprep.subr.mxu0 0.0
    %1243 = vmatpush1.xpose.msra.mxu0 0.0
    %1244 = vmatprep.subr.mxu0 0.0
    %1245 = vmatpush1.xpose.msra.mxu0 0.0
    %1246 = vmatprep.subr.mxu0 0.0
    %1247 = vmatpush1.xpose.msra.mxu0 0.0
    %1248 = vmatprep.subr.mxu0 0.0
    %1249 = vmatpush1.xpose.msra.mxu0 0.0
    %1250 = vmatprep.subr.mxu0 0.0
    %1251 = vmatpush1.xpose.msra.mxu0 0.0
    %1252 = vmatprep.subr.mxu0 0.0
    %1253 = vmatpush1.xpose.msra.mxu0 0.0
    %1254 = vmatprep.subr.mxu0 0.0
    %1255 = vmatpush1.xpose.msra.mxu0 0.0
    %1256 = vmatprep.subr.mxu0 0.0
    %1257 = vmatpush1.xpose.msra.mxu0 0.0
    %1258 = vmatprep.subr.mxu0 0.0
    %1259 = vmatpush1.xpose.msra.mxu0 0.0
    %1260 = vmatprep.subr.mxu0 0.0
    %1261 = vmatpush1.xpose.msra.mxu0 0.0
    %1262 = vmatprep.subr.mxu0 0.0
    %1263 = vmatpush1.xpose.msra.mxu0 0.0
    %1264 = vmatprep.subr.mxu0 0.0
    %1265 = vmatpush1.xpose.msra.mxu0 0.0
    %1266 = vmatprep.subr.mxu0 0.0
    %1267 = vmatpush1.xpose.msra.mxu0 0.0
    %1268 = vmatprep.subr.mxu0 0.0
    %1269 = vmatpush1.xpose.msra.mxu0 0.0
    %1270 = vmatprep.subr.mxu0 0.0
    %1271 = vmatpush1.xpose.msra.mxu0 0.0
    %1272 = vmatprep.subr.mxu0 0.0
    %1273 = vmatpush1.xpose.msra.mxu0 0.0
    %1274 = vmatprep.subr.mxu0 0.0
    %1275 = vmatpush1.xpose.msra.mxu0 0.0
    %1276 = vmatprep.subr.mxu0 0.0
    %1277 = vmatpush1.xpose.msra.mxu0 0.0
    %1278 = vmatprep.subr.mxu0 0.0
    %1279 = vmatpush1.xpose.msra.mxu0 0.0
    %1280 = vmatprep.subr.mxu0 0.0
    %1281 = vmatpush1.xpose.msra.mxu0 0.0
    %1282 = vmatprep.subr.mxu0 0.0
    %1283 = vmatpush1.xpose.msra.mxu0 0.0
    %1284 = vmatprep.subr.mxu0 0.0
    %1285 = vmatpush1.xpose.msra.mxu0 0.0
    %1286 = vmatprep.subr.mxu0 0.0
    %1287 = vmatpush1.xpose.msra.mxu0 0.0
    %1288 = vmatprep.subr.mxu0 0.0
    %1289 = vmatpush1.xpose.msra.mxu0 0.0
    %1290 = vmatprep.subr.mxu0 0.0
    %1291 = vmatpush1.xpose.msra.mxu0 0.0
    %1292 = vmatprep.subr.mxu0 0.0
    %1293 = vmatpush1.xpose.msra.mxu0 0.0
    %1294 = vmatprep.mubr.f32.mxu0 0.0
    %1295 = vmatmul.mubr.f32.gmra.mrb[0].mxu0 %v1226
    %v1296 = vpop.f32.mrb[0].mxu0
    %v1297 = vadd.f32 0.0, %v1296
    %v1298 = vpop.f32.mrb[0].mxu0
    %1299 = vdwg.mxu0
    %v1300 = vsel %vm158, %v1219, -inf
    %1301 = vmax.xlane.f32.xlu0 %v1300
    %v1302 = vpop.xlane.xlu0 %1301
    %v1303 = vsel %vm158, %v1297, -inf
    %1304 = vmax.xlane.f32.xlu0 %v1303
    %v1305 = vpop.xlane.xlu0 %1304
    %v1306 = vsub.f32 %v1219, %v1302
    %v1307 = vsub.f32 %v1297, %v1305
    %v1308 = vmul.f32 %v1306, 1.442695
    %v1309 = vpow.pop %v1308
    %v1310 = vmul.f32 %v1307, 1.442695
    %v1311 = vpow.pop %v1310
    %v1312 = vsel %vm158, %v1309, 0.0
    %1313 = vadd.xlane.f32.xlu0 %v1312
    %v1314 = vpop.xlane.xlu0 %1313
    %v1315 = vsel %vm158, %v1311, 0.0
    %1316 = vadd.xlane.f32.xlu0 %v1315
    %v1317 = vpop.xlane.xlu0 %1316
    %v1318 = vrcp.pop %v1314
    %v1319 = vmul.f32 %v1309, %v1318
    %v1320 = vrcp.pop %v1317
    %v1321 = vmul.f32 %v1311, %v1320
    %1322 = vrot.lane.b32.xlu0 %v147, 40
    %v1323 = vpop.permute.xlu0 %1322
    %v1326 = vsel %vm158, %v1319, 0
    %1328 = vmatprep.subr.mxu0 0.0
    %1329 = vmatpush1.msra.mxu0 %v1323
    %1330 = vmatprep.subr.mxu0 0.0
    %1331 = vmatpush1.msra.mxu0 0.0
    %1332 = vmatprep.subr.mxu0 0.0
    %1333 = vmatpush1.msra.mxu0 0.0
    %1334 = vmatprep.subr.mxu0 0.0
    %1335 = vmatpush1.msra.mxu0 0.0
    %1336 = vmatprep.subr.mxu0 0.0
    %1337 = vmatpush1.msra.mxu0 0.0
    %1338 = vmatprep.subr.mxu0 0.0
    %1339 = vmatpush1.msra.mxu0 0.0
    %1340 = vmatprep.subr.mxu0 0.0
    %1341 = vmatpush1.msra.mxu0 0.0
    %1342 = vmatprep.subr.mxu0 0.0
    %1343 = vmatpush1.msra.mxu0 0.0
    %1344 = vmatprep.subr.mxu0 0.0
    %1345 = vmatpush1.msra.mxu0 0.0
    %1346 = vmatprep.subr.mxu0 0.0
    %1347 = vmatpush1.msra.mxu0 0.0
    %1348 = vmatprep.subr.mxu0 0.0
    %1349 = vmatpush1.msra.mxu0 0.0
    %1350 = vmatprep.subr.mxu0 0.0
    %1351 = vmatpush1.msra.mxu0 0.0
    %1352 = vmatprep.subr.mxu0 0.0
    %1353 = vmatpush1.msra.mxu0 0.0
    %1354 = vmatprep.subr.mxu0 0.0
    %1355 = vmatpush1.msra.mxu0 0.0
    %1356 = vmatprep.subr.mxu0 0.0
    %1357 = vmatpush1.msra.mxu0 0.0
    %1358 = vmatprep.subr.mxu0 0.0
    %1359 = vmatpush1.msra.mxu0 0.0
    %1360 = vmatprep.subr.mxu0 0.0
    %1361 = vmatpush1.msra.mxu0 0.0
    %1362 = vmatprep.subr.mxu0 0.0
    %1363 = vmatpush1.msra.mxu0 0.0
    %1364 = vmatprep.subr.mxu0 0.0
    %1365 = vmatpush1.msra.mxu0 0.0
    %1366 = vmatprep.subr.mxu0 0.0
    %1367 = vmatpush1.msra.mxu0 0.0
    %1368 = vmatprep.subr.mxu0 0.0
    %1369 = vmatpush1.msra.mxu0 0.0
    %1370 = vmatprep.subr.mxu0 0.0
    %1371 = vmatpush1.msra.mxu0 0.0
    %1372 = vmatprep.subr.mxu0 0.0
    %1373 = vmatpush1.msra.mxu0 0.0
    %1374 = vmatprep.subr.mxu0 0.0
    %1375 = vmatpush1.msra.mxu0 0.0
    %1376 = vmatprep.subr.mxu0 0.0
    %1377 = vmatpush1.msra.mxu0 0.0
    %1378 = vmatprep.subr.mxu0 0.0
    %1379 = vmatpush1.msra.mxu0 0.0
    %1380 = vmatprep.subr.mxu0 0.0
    %1381 = vmatpush1.msra.mxu0 0.0
    %1382 = vmatprep.subr.mxu0 0.0
    %1383 = vmatpush1.msra.mxu0 0.0
    %1384 = vmatprep.subr.mxu0 0.0
    %1385 = vmatpush1.msra.mxu0 0.0
    %1386 = vmatprep.subr.mxu0 0.0
    %1387 = vmatpush1.msra.mxu0 0.0
    %1388 = vmatprep.subr.mxu0 0.0
    %1389 = vmatpush1.msra.mxu0 0.0
    %1390 = vmatprep.subr.mxu0 0.0
    %1391 = vmatpush1.msra.mxu0 0.0
    %1392 = vmatprep.mubr.f32.mxu0 0.0
    %1393 = vmatmul.mubr.f32.gmra.mrb[0].mxu0 %v1326
    %v1394 = vpop.f32.mrb[0].mxu0
    %v1395 = vadd.f32 0.0, %v1394
    %v1396 = vpop.f32.mrb[0].mxu0
    %1397 = vdwg.mxu0
    %1398 = vrot.lane.b32.xlu0 %v152, 40
    %v1399 = vpop.permute.xlu0 %1398
    %v1402 = vsel %vm158, %v1321, 0
    %1404 = vmatprep.subr.mxu0 0.0
    %1405 = vmatpush1.msra.mxu0 %v1399
    %1406 = vmatprep.subr.mxu0 0.0
    %1407 = vmatpush1.msra.mxu0 0.0
    %1408 = vmatprep.subr.mxu0 0.0
    %1409 = vmatpush1.msra.mxu0 0.0
    %1410 = vmatprep.subr.mxu0 0.0
    %1411 = vmatpush1.msra.mxu0 0.0
    %1412 = vmatprep.subr.mxu0 0.0
    %1413 = vmatpush1.msra.mxu0 0.0
    %1414 = vmatprep.subr.mxu0 0.0
    %1415 = vmatpush1.msra.mxu0 0.0
    %1416 = vmatprep.subr.mxu0 0.0
    %1417 = vmatpush1.msra.mxu0 0.0
    %1418 = vmatprep.subr.mxu0 0.0
    %1419 = vmatpush1.msra.mxu0 0.0
    %1420 = vmatprep.subr.mxu0 0.0
    %1421 = vmatpush1.msra.mxu0 0.0
    %1422 = vmatprep.subr.mxu0 0.0
    %1423 = vmatpush1.msra.mxu0 0.0
    %1424 = vmatprep.subr.mxu0 0.0
    %1425 = vmatpush1.msra.mxu0 0.0
    %1426 = vmatprep.subr.mxu0 0.0
    %1427 = vmatpush1.msra.mxu0 0.0
    %1428 = vmatprep.subr.mxu0 0.0
    %1429 = vmatpush1.msra.mxu0 0.0
    %1430 = vmatprep.subr.mxu0 0.0
    %1431 = vmatpush1.msra.mxu0 0.0
    %1432 = vmatprep.subr.mxu0 0.0
    %1433 = vmatpush1.msra.mxu0 0.0
    %1434 = vmatprep.subr.mxu0 0.0
    %1435 = vmatpush1.msra.mxu0 0.0
    %1436 = vmatprep.subr.mxu0 0.0
    %1437 = vmatpush1.msra.mxu0 0.0
    %1438 = vmatprep.subr.mxu0 0.0
    %1439 = vmatpush1.msra.mxu0 0.0
    %1440 = vmatprep.subr.mxu0 0.0
    %1441 = vmatpush1.msra.mxu0 0.0
    %1442 = vmatprep.subr.mxu0 0.0
    %1443 = vmatpush1.msra.mxu0 0.0
    %1444 = vmatprep.subr.mxu0 0.0
    %1445 = vmatpush1.msra.mxu0 0.0
    %1446 = vmatprep.subr.mxu0 0.0
    %1447 = vmatpush1.msra.mxu0 0.0
    %1448 = vmatprep.subr.mxu0 0.0
    %1449 = vmatpush1.msra.mxu0 0.0
    %1450 = vmatprep.subr.mxu0 0.0
    %1451 = vmatpush1.msra.mxu0 0.0
    %1452 = vmatprep.subr.mxu0 0.0
    %1453 = vmatpush1.msra.mxu0 0.0
    %1454 = vmatprep.subr.mxu0 0.0
    %1455 = vmatpush1.msra.mxu0 0.0
    %1456 = vmatprep.subr.mxu0 0.0
    %1457 = vmatpush1.msra.mxu0 0.0
    %1458 = vmatprep.subr.mxu0 0.0
    %1459 = vmatpush1.msra.mxu0 0.0
    %1460 = vmatprep.subr.mxu0 0.0
    %1461 = vmatpush1.msra.mxu0 0.0
    %1462 = vmatprep.subr.mxu0 0.0
    %1463 = vmatpush1.msra.mxu0 0.0
    %1464 = vmatprep.subr.mxu0 0.0
    %1465 = vmatpush1.msra.mxu0 0.0
    %1466 = vmatprep.subr.mxu0 0.0
    %1467 = vmatpush1.msra.mxu0 0.0
    %1468 = vmatprep.mubr.f32.mxu0 0.0
    %1469 = vmatmul.mubr.f32.gmra.mrb[0].mxu0 %v1402
    %v1470 = vpop.f32.mrb[0].mxu0
    %v1471 = vadd.f32 0.0, %v1470
    %v1472 = vpop.f32.mrb[0].mxu0
    %1473 = vdwg.mxu0
    %1476 = vrot.lane.b32.xlu0 %v735, 8
    %v1477 = vpop.permute.xlu0 %1476
    %1478 = vrot.lane.b32.xlu0 %v811, 8
    %v1479 = vpop.permute.xlu0 %1478
    %1484 = vrot.lane.b32.xlu0 %v1065, 16
    %v1485 = vpop.permute.xlu0 %1484
    %1486 = vrot.lane.b32.xlu0 %v1141, 16
    %v1487 = vpop.permute.xlu0 %1486
    %1492 = vrot.lane.b32.xlu0 %v1395, 24
    %v1493 = vpop.permute.xlu0 %1492
    %1494 = vrot.lane.b32.xlu0 %v1471, 24
    %v1495 = vpop.permute.xlu0 %1494
    %v1498 = vsel %vm158, %v405, %v1477
    %v1499 = vsel %vm158, %v481, %v1479
    %vm1500 = vcmask 130048
    %v1501 = vsel %vm1500, %v1498, %v1485
    %v1502 = vsel %vm1500, %v1499, %v1487
    %vm1503 = vcmask 195584
    %v1504 = vsel %vm1503, %v1501, %v1493
    %v1505 = vsel %vm1503, %v1502, %v1495
    %1510 = vrot.lane.b32.xlu0 %v56, 32
    %v1511 = vpop.permute.xlu0 %1510
    %1512 = vrot.lane.b32.xlu0 %v57, 32
    %v1513 = vpop.permute.xlu0 %1512
    %1514 = vrot.lane.b32.xlu0 %v58, 32
    %v1515 = vpop.permute.xlu0 %1514
    %1516 = vrot.lane.b32.xlu0 %v59, 32
    %v1517 = vpop.permute.xlu0 %1516
    %v1523 = vsel %vm73, %v1504, 0
    %v1526 = vsel %vm73, %v1505, 0
    %1528 = vmatprep.subr.mxu0 0.0
    %1529 = vmatpush1.msra.mxu0 %v1511
    %1530 = vmatprep.subr.mxu0 0.0
    %1531 = vmatpush1.msra.mxu0 %v1513
    %1532 = vmatprep.subr.mxu0 0.0
    %1533 = vmatpush1.msra.mxu0 %v1515
    %1534 = vmatprep.subr.mxu0 0.0
    %1535 = vmatpush1.msra.mxu0 %v1517
    %1536 = vmatprep.subr.mxu0 0.0
    %1537 = vmatpush1.msra.mxu0 0.0
    %1538 = vmatprep.subr.mxu0 0.0
    %1539 = vmatpush1.msra.mxu0 0.0
    %1540 = vmatprep.subr.mxu0 0.0
    %1541 = vmatpush1.msra.mxu0 0.0
    %1542 = vmatprep.subr.mxu0 0.0
    %1543 = vmatpush1.msra.mxu0 0.0
    %1544 = vmatprep.subr.mxu0 0.0
    %1545 = vmatpush1.msra.mxu0 0.0
    %1546 = vmatprep.subr.mxu0 0.0
    %1547 = vmatpush1.msra.mxu0 0.0
    %1548 = vmatprep.subr.mxu0 0.0
    %1549 = vmatpush1.msra.mxu0 0.0
    %1550 = vmatprep.subr.mxu0 0.0
    %1551 = vmatpush1.msra.mxu0 0.0
    %1552 = vmatprep.subr.mxu0 0.0
    %1553 = vmatpush1.msra.mxu0 0.0
    %1554 = vmatprep.subr.mxu0 0.0
    %1555 = vmatpush1.msra.mxu0 0.0
    %1556 = vmatprep.subr.mxu0 0.0
    %1557 = vmatpush1.msra.mxu0 0.0
    %1558 = vmatprep.subr.mxu0 0.0
    %1559 = vmatpush1.msra.mxu0 0.0
    %1560 = vmatprep.subr.mxu0 0.0
    %1561 = vmatpush1.msra.mxu0 0.0
    %1562 = vmatprep.subr.mxu0 0.0
    %1563 = vmatpush1.msra.mxu0 0.0
    %1564 = vmatprep.subr.mxu0 0.0
    %1565 = vmatpush1.msra.mxu0 0.0
    %1566 = vmatprep.subr.mxu0 0.0
    %1567 = vmatpush1.msra.mxu0 0.0
    %1568 = vmatprep.subr.mxu0 0.0
    %1569 = vmatpush1.msra.mxu0 0.0
    %1570 = vmatprep.subr.mxu0 0.0
    %1571 = vmatpush1.msra.mxu0 0.0
    %1572 = vmatprep.subr.mxu0 0.0
    %1573 = vmatpush1.msra.mxu0 0.0
    %1574 = vmatprep.subr.mxu0 0.0
    %1575 = vmatpush1.msra.mxu0 0.0
    %1576 = vmatprep.subr.mxu0 0.0
    %1577 = vmatpush1.msra.mxu0 0.0
    %1578 = vmatprep.subr.mxu0 0.0
    %1579 = vmatpush1.msra.mxu0 0.0
    %1580 = vmatprep.subr.mxu0 0.0
    %1581 = vmatpush1.msra.mxu0 0.0
    %1582 = vmatprep.subr.mxu0 0.0
    %1583 = vmatpush1.msra.mxu0 0.0
    %1584 = vmatprep.subr.mxu0 0.0
    %1585 = vmatpush1.msra.mxu0 0.0
    %1586 = vmatprep.subr.mxu0 0.0
    %1587 = vmatpush1.msra.mxu0 0.0
    %1588 = vmatprep.subr.mxu0 0.0
    %1589 = vmatpush1.msra.mxu0 0.0
    %1590 = vmatprep.subr.mxu0 0.0
    %1591 = vmatpush1.msra.mxu0 0.0
    %1592 = vmatprep.mubr.f32.mxu0 0.0
    %1593 = vmatmul.mubr.f32.gmra.mrb[0].mxu0 %v1523
    %v1594 = vpop.f32.mrb[0].mxu0
    %v1595 = vadd.f32 0.0, %v1594
    %v1596 = vpop.f32.mrb[0].mxu0
    %1597 = vmatprep.mubr.f32.mxu0 0.0
    %1598 = vmatmul.mubr.f32.gmra.mrb[0].mxu0 %v1526
    %v1599 = vpop.f32.mrb[0].mxu0
    %v1600 = vadd.f32 0.0, %v1599
    %v1601 = vpop.f32.mrb[0].mxu0
    %1602 = vdwg.mxu0
    %v1603 = vadd.f32 %v54, %v1595
    %v1604 = vadd.f32 %v55, %v1600
    %v1605 = vlaneseq
    %v1606 = vshrl.u32 %v1605, 7
    %v1607 = vsub.s32 2, %v1606
    %v1608 = vrot.slane %v68, %v1607
    %v1609 = vadd.f32 %v1603, %v1608
    %v1610 = vadd.f32 %v1604, %v1608
    %v1611 = vsel %vm73, %v1609, 0.0
    %1612 = vadd.xlane.f32.xlu0 %v1611
    %v1613 = vpop.xlane.xlu0 %1612
    %v1614 = vsel %vm73, %v1610, 0.0
    %1615 = vadd.xlane.f32.xlu0 %v1614
    %v1616 = vpop.xlane.xlu0 %1615
    %v1617 = vrcp.pop 32.0
    %v1618 = vmul.f32 %v1613, %v1617
    %v1619 = vmul.f32 %v1616, %v1617
    %v1620 = vsub.f32 %v1609, %v1618
    %v1621 = vsub.f32 %v1610, %v1619
    %v1622 = vmul.f32 %v1620, %v1620
    %v1623 = vmul.f32 %v1621, %v1621
    %v1624 = vsel %vm73, %v1622, 0.0
    %1625 = vadd.xlane.f32.xlu0 %v1624
    %v1626 = vpop.xlane.xlu0 %1625
    %v1627 = vsel %vm73, %v1623, 0.0
    %1628 = vadd.xlane.f32.xlu0 %v1627
    %v1629 = vpop.xlane.xlu0 %1628
    %v1630 = vmul.f32 %v1626, %v1617
    %v1631 = vmul.f32 %v1629, %v1617
    %v1632 = vadd.f32 %v1630, 1e-05
    %v1633 = vadd.f32 %v1631, 1e-05
    %v1634 = vrsqrt.pop %v1632
    %v1635 = vrsqrt.pop %v1633
    %v1636 = vmul.f32 %v1620, %v1634
    %v1637 = vmul.f32 %v1621, %v1635
    %v1638 = vlaneseq
    %v1639 = vshrl.u32 %v1638, 7
    %v1640 = vsub.s32 3, %v1639
    %v1641 = vrot.slane %v68, %v1640
    %v1642 = vmul.f32 %v1636, %v1641
    %v1643 = vmul.f32 %v1637, %v1641
    %v1644 = vlaneseq
    %v1645 = vshrl.u32 %v1644, 7
    %v1646 = vsub.s32 4, %v1645
    %v1647 = vrot.slane %v68, %v1646
    %v1648 = vadd.f32 %v1642, %v1647
    %v1649 = vadd.f32 %v1643, %v1647
    %v1650 = vlaneseq
    %v1651 = vshrl.u32 %v1650, 7
    %v1652 = vsub.s32 1, %v1651
    %v1653 = vrot.slane %v68, %v1652
    %v1655 = vsel %vm73, %v1648, 0
    %v1658 = vsel %vm73, %v1649, 0
    %1660 = vmatprep.subr.mxu0 0.0
    %1661 = vmatpush1.msra.mxu0 %v60
    %1662 = vmatprep.subr.mxu0 0.0
    %1663 = vmatpush1.msra.mxu0 %v61
    %1664 = vmatprep.subr.mxu0 0.0
    %1665 = vmatpush1.msra.mxu0 %v62
    %1666 = vmatprep.subr.mxu0 0.0
    %1667 = vmatpush1.msra.mxu0 %v63
    %1668 = vmatprep.subr.mxu0 0.0
    %1669 = vmatpush1.msra.mxu0 0.0
    %1670 = vmatprep.subr.mxu0 0.0
    %1671 = vmatpush1.msra.mxu0 0.0
    %1672 = vmatprep.subr.mxu0 0.0
    %1673 = vmatpush1.msra.mxu0 0.0
    %1674 = vmatprep.subr.mxu0 0.0
    %1675 = vmatpush1.msra.mxu0 0.0
    %1676 = vmatprep.subr.mxu0 0.0
    %1677 = vmatpush1.msra.mxu0 0.0
    %1678 = vmatprep.subr.mxu0 0.0
    %1679 = vmatpush1.msra.mxu0 0.0
    %1680 = vmatprep.subr.mxu0 0.0
    %1681 = vmatpush1.msra.mxu0 0.0
    %1682 = vmatprep.subr.mxu0 0.0
    %1683 = vmatpush1.msra.mxu0 0.0
    %1684 = vmatprep.subr.mxu0 0.0
    %1685 = vmatpush1.msra.mxu0 0.0
    %1686 = vmatprep.subr.mxu0 0.0
    %1687 = vmatpush1.msra.mxu0 0.0
    %1688 = vmatprep.subr.mxu0 0.0
    %1689 = vmatpush1.msra.mxu0 0.0
    %1690 = vmatprep.subr.mxu0 0.0
    %1691 = vmatpush1.msra.mxu0 0.0
    %1692 = vmatprep.subr.mxu0 0.0
    %1693 = vmatpush1.msra.mxu0 0.0
    %1694 = vmatprep.subr.mxu0 0.0
    %1695 = vmatpush1.msra.mxu0 0.0
    %1696 = vmatprep.subr.mxu0 0.0
    %1697 = vmatpush1.msra.mxu0 0.0
    %1698 = vmatprep.subr.mxu0 0.0
    %1699 = vmatpush1.msra.mxu0 0.0
    %1700 = vmatprep.subr.mxu0 0.0
    %1701 = vmatpush1.msra.mxu0 0.0
    %1702 = vmatprep.subr.mxu0 0.0
    %1703 = vmatpush1.msra.mxu0 0.0
    %1704 = vmatprep.subr.mxu0 0.0
    %1705 = vmatpush1.msra.mxu0 0.0
    %1706 = vmatprep.subr.mxu0 0.0
    %1707 = vmatpush1.msra.mxu0 0.0
    %1708 = vmatprep.subr.mxu0 0.0
    %1709 = vmatpush1.msra.mxu0 0.0
    %1710 = vmatprep.subr.mxu0 0.0
    %1711 = vmatpush1.msra.mxu0 0.0
    %1712 = vmatprep.subr.mxu0 0.0
    %1713 = vmatpush1.msra.mxu0 0.0
    %1714 = vmatprep.subr.mxu0 0.0
    %1715 = vmatpush1.msra.mxu0 0.0
    %1716 = vmatprep.subr.mxu0 0.0
    %1717 = vmatpush1.msra.mxu0 0.0
    %1718 = vmatprep.subr.mxu0 0.0
    %1719 = vmatpush1.msra.mxu0 0.0
    %1720 = vmatprep.subr.mxu0 0.0
    %1721 = vmatpush1.msra.mxu0 0.0
    %1722 = vmatprep.subr.mxu0 0.0
    %1723 = vmatpush1.msra.mxu0 0.0
    %1724 = vmatprep.mubr.f32.mxu0 0.0
    %1725 = vmatmul.mubr.f32.gmra.mrb[0].mxu0 %v1655
    %v1726 = vpop.f32.mrb[0].mxu0
    %v1727 = vadd.f32 %v1653, %v1726
    %v1728 = vpop.f32.mrb[0].mxu0
    %1729 = vmatprep.mubr.f32.mxu0 0.0
    %1730 = vmatmul.mubr.f32.gmra.mrb[0].mxu0 %v1658
    %v1731 = vpop.f32.mrb[0].mxu0
    %v1732 = vadd.f32 %v1653, %v1731
    %v1733 = vpop.f32.mrb[0].mxu0
    %1734 = vdwg.mxu0
    %v1735 = vmax.f32 %v1727, 0.0
    %v1736 = vmax.f32 %v1732, 0.0
    %v1737 = vlaneseq
    %v1738 = vshrl.u32 %v1737, 7
    %v1739 = vsub.s32 5, %v1738
    %v1740 = vrot.slane %v68, %v1739
    %1741 = vmatprep.subr.mxu0 0.0
    %1742 = vmatpush1.xpose.msra.mxu0 %v64
    %1743 = vmatprep.subr.mxu0 0.0
    %1744 = vmatpush1.xpose.msra.mxu0 %v65
    %1745 = vmatprep.subr.mxu0 0.0
    %1746 = vmatpush1.xpose.msra.mxu0 %v66
    %1747 = vmatprep.subr.mxu0 0.0
    %1748 = vmatpush1.xpose.msra.mxu0 %v67
    %1749 = vmatprep.subr.mxu0 0.0
    %1750 = vmatpush1.xpose.msra.mxu0 0.0
    %1751 = vmatprep.subr.mxu0 0.0
    %1752 = vmatpush1.xpose.msra.mxu0 0.0
    %1753 = vmatprep.subr.mxu0 0.0
    %1754 = vmatpush1.xpose.msra.mxu0 0.0
    %1755 = vmatprep.subr.mxu0 0.0
    %1756 = vmatpush1.xpose.msra.mxu0 0.0
    %1757 = vmatprep.subr.mxu0 0.0
    %1758 = vmatpush1.xpose.msra.mxu0 0.0
    %1759 = vmatprep.subr.mxu0 0.0
    %1760 = vmatpush1.xpose.msra.mxu0 0.0
    %1761 = vmatprep.subr.mxu0 0.0
    %1762 = vmatpush1.xpose.msra.mxu0 0.0
    %1763 = vmatprep.subr.mxu0 0.0
    %1764 = vmatpush1.xpose.msra.mxu0 0.0
    %1765 = vmatprep.subr.mxu0 0.0
    %1766 = vmatpush1.xpose.msra.mxu0 0.0
    %1767 = vmatprep.subr.mxu0 0.0
    %1768 = vmatpush1.xpose.msra.mxu0 0.0
    %1769 = vmatprep.subr.mxu0 0.0
    %1770 = vmatpush1.xpose.msra.mxu0 0.0
    %1771 = vmatprep.subr.mxu0 0.0
    %1772 = vmatpush1.xpose.msra.mxu0 0.0
    %1773 = vmatprep.subr.mxu0 0.0
    %1774 = vmatpush1.xpose.msra.mxu0 0.0
    %1775 = vmatprep.subr.mxu0 0.0
    %1776 = vmatpush1.xpose.msra.mxu0 0.0
    %1777 = vmatprep.subr.mxu0 0.0
    %1778 = vmatpush1.xpose.msra.mxu0 0.0
    %1779 = vmatprep.subr.mxu0 0.0
    %1780 = vmatpush1.xpose.msra.mxu0 0.0
    %1781 = vmatprep.subr.mxu0 0.0
    %1782 = vmatpush1.xpose.msra.mxu0 0.0
    %1783 = vmatprep.subr.mxu0 0.0
    %1784 = vmatpush1.xpose.msra.mxu0 0.0
    %1785 = vmatprep.subr.mxu0 0.0
    %1786 = vmatpush1.xpose.msra.mxu0 0.0
    %1787 = vmatprep.subr.mxu0 0.0
    %1788 = vmatpush1.xpose.msra.mxu0 0.0
    %1789 = vmatprep.subr.mxu0 0.0
    %1790 = vmatpush1.xpose.msra.mxu0 0.0
    %1791 = vmatprep.subr.mxu0 0.0
    %1792 = vmatpush1.xpose.msra.mxu0 0.0
    %1793 = vmatprep.subr.mxu0 0.0
    %1794 = vmatpush1.xpose.msra.mxu0 0.0
    %1795 = vmatprep.subr.mxu0 0.0
    %1796 = vmatpush1.xpose.msra.mxu0 0.0
    %1797 = vmatprep.subr.mxu0 0.0
    %1798 = vmatpush1.xpose.msra.mxu0 0.0
    %1799 = vmatprep.subr.mxu0 0.0
    %1800 = vmatpush1.xpose.msra.mxu0 0.0
    %1801 = vmatprep.subr.mxu0 0.0
    %1802 = vmatpush1.xpose.msra.mxu0 0.0
    %1803 = vmatprep.subr.mxu0 0.0
    %1804 = vmatpush1.xpose.msra.mxu0 0.0
    %1805 = vmatprep.mubr.f32.mxu0 0.0
    %1806 = vmatmul.mubr.f32.gmra.mrb[0].mxu0 %v1735
    %v1807 = vpop.f32.mrb[0].mxu0
    %v1808 = vadd.f32 %v1740, %v1807
    %v1809 = vpop.f32.mrb[0].mxu0
    %1810 = vmatprep.mubr.f32.mxu0 0.0
    %1811 = vmatmul.mubr.f32.gmra.mrb[0].mxu0 %v1736
    %v1812 = vpop.f32.mrb[0].mxu0
    %v1813 = vadd.f32 %v1740, %v1812
    %v1814 = vpop.f32.mrb[0].mxu0
    %1815 = vdwg.mxu0
    %v1816 = vadd.f32 %v1648, %v1808
    %v1817 = vadd.f32 %v1649, %v1813
    %v1818 = vsel %vm73, %v1816, 0.0
    %1819 = vadd.xlane.f32.xlu0 %v1818
    %v1820 = vpop.xlane.xlu0 %1819
    %v1821 = vsel %vm73, %v1817, 0.0
    %1822 = vadd.xlane.f32.xlu0 %v1821
    %v1823 = vpop.xlane.xlu0 %1822
    %v1824 = vmul.f32 %v1820, %v1617
    %v1825 = vmul.f32 %v1823, %v1617
    %v1826 = vsub.f32 %v1816, %v1824
    %v1827 = vsub.f32 %v1817, %v1825
    %v1828 = vmul.f32 %v1826, %v1826
    %v1829 = vmul.f32 %v1827, %v1827
    %v1830 = vsel %vm73, %v1828, 0.0
    %1831 = vadd.xlane.f32.xlu0 %v1830
    %v1832 = vpop.xlane.xlu0 %1831
    %v1833 = vsel %vm73, %v1829, 0.0
    %1834 = vadd.xlane.f32.xlu0 %v1833
    %v1835 = vpop.xlane.xlu0 %1834
    %v1836 = vmul.f32 %v1832, %v1617
    %v1837 = vmul.f32 %v1835, %v1617
    %v1838 = vadd.f32 %v1836, 1e-05
    %v1839 = vadd.f32 %v1837, 1e-05
    %v1840 = vrsqrt.pop %v1838
    %v1841 = vrsqrt.pop %v1839
    %v1842 = vmul.f32 %v1826, %v1840
    %v1843 = vmul.f32 %v1827, %v1841
    %v1844 = vlaneseq
    %v1845 = vshrl.u32 %v1844, 7
    %v1846 = vsub.s32 6, %v1845
    %v1847 = vrot.slane %v68, %v1846
    %v1848 = vmul.f32 %v1842, %v1847
    %v1849 = vmul.f32 %v1843, %v1847
    %v1850 = vlaneseq
    %v1851 = vshrl.u32 %v1850, 7
    %v1852 = vsub.s32 7, %v1851
    %v1853 = vrot.slane %v68, %v1852
    %v1854 = vadd.f32 %v1848, %v1853
    %v1855 = vadd.f32 %v1849, %v1853
    %1856 = vst.msk [vmem:[#allocation8] sm:$0xff] %vm73, %v1854
    %1857 = vst.msk [vmem:[#allocation8 + $0x8] sm:$0xff] %vm73, %v1855
    // Predicated region
    $region26: #{transformer_block.1} parent=1 // pred_check
      _
    $region27: #{transformer_block.1} parent=1 // pred_check_branch
      %1859 = sbr.rel (0) target = $region29
    $region28: #{transformer_block.1} parent=1 // pred_region
      %s1861 = ssub.s32 256, 256
      %1862 = vsyncadd [#allocation4], %s1861
      %s1863 = sshll.u32 [#allocation8], 4
      %s1864 = int_to_ptr.vmem [resolvable:$true] %s1863
      %1869 = dma.vmem_to_hbm [thread:$0]  %s1864, 256, %s3, [#allocation4], 128, 128, 8
    $region29: #{transformer_block.1} parent=1 // pred_fallthru
      _
    // Predicated region
    $region30: #{transformer_block.1} parent=1 // pred_check
      _
    $region31: #{transformer_block.1} parent=1 // pred_check_branch
      %1871 = sbr.rel (0) target = $region33
    $region32: #{transformer_block.1} parent=1 // pred_region
      %1872 = dma.done [#allocation4], 256
    $region33: #{transformer_block.1} parent=1 // pred_fallthru
      _
    %1873 = vsyncpa [#allocation3], 1
    %1874 = vsyncpa [#allocation6], 1
    %1875 = vsyncpa [#allocation4], 1

</llo_original>
